<compile_context>
chip_gen: v6e
topology: v6e:2x2x1
jax: 0.10.0
libtpu: 0.0.40
codegen_flags: <defaults>
</compile_context>

<pallas_src>
import math

import jax
import jax.numpy as jnp
from jax.experimental import pallas as pl
from jax.experimental.pallas import tpu as pltpu

HIDDEN = 128                     # MyViLBERT(128) hidden size per stream
INNER = 29                       # sequence length ("inner")
D_MODEL = INNER * HIDDEN * 2     # 7424, hard-coded in the PyTorch module
FC_INNER = 1024
NUM_CLASSES = 5
TN = 256                         # fc1 output-column tile per grid step
LN_EPS = 1e-5


# ----------------------------------------------------------------------------
# Kernel A: two-stream ViLBERT co-attention, one batch element per grid step.
# Weights: attn_w (8, 128, 128) = [Wq_e, Wk_e, Wv_e, Wo_e, Wq_o, Wk_o, Wv_o, Wo_o]
# Output is written directly in the concatenated layout (1, 29, 256):
#   lanes [0:128] = eeg stream, lanes [128:256] = eog stream.
# ----------------------------------------------------------------------------
def coattn_kernel(xe_ref, xo_ref, w_ref, b_ref, g_ref, beta_ref, o_ref):
    xe = xe_ref[0]                                     # (29, 128) f32
    xo = xo_ref[0]
    scale = 1.0 / math.sqrt(HIDDEN)

    def proj(x, i):
        return (jnp.dot(x, w_ref[i], preferred_element_type=jnp.float32)
                + b_ref[i:i + 1])

    q_e, k_e, v_e = proj(xe, 0), proj(xe, 1), proj(xe, 2)
    q_o, k_o, v_o = proj(xo, 4), proj(xo, 5), proj(xo, 6)

    def attend(q, k, v):
        s = jax.lax.dot_general(
            q, k, (((1,), (1,)), ((), ())),
            preferred_element_type=jnp.float32) * scale        # (29, 29)
        m = jnp.max(s, axis=-1, keepdims=True)
        e = jnp.exp(s - m)
        p = e * pl.reciprocal(jnp.sum(e, axis=-1, keepdims=True), approx=True)
        return jnp.dot(p, v, preferred_element_type=jnp.float32)

    # ViLBERT co-attention: each stream's queries attend to the *other*
    # stream's keys / values.
    a_e = attend(q_e, k_o, v_o)
    a_o = attend(q_o, k_e, v_e)

    h_e = xe + jnp.dot(a_e, w_ref[3],
                       preferred_element_type=jnp.float32) + b_ref[3:4]
    h_o = xo + jnp.dot(a_o, w_ref[7],
                       preferred_element_type=jnp.float32) + b_ref[7:8]

    def layer_norm(h, g, beta):
        mu = jnp.mean(h, axis=-1, keepdims=True)
        var = jnp.mean((h - mu) * (h - mu), axis=-1, keepdims=True)
        return (h - mu) * jax.lax.rsqrt(var + LN_EPS) * g + beta

    o_ref[0, :, 0:HIDDEN] = layer_norm(h_e, g_ref[0:1], beta_ref[0:1])
    o_ref[0, :, HIDDEN:2 * HIDDEN] = layer_norm(h_o, g_ref[1:2], beta_ref[1:2])


def vilbert_coattn(xeeg, xeog, p):
    B = xeeg.shape[0]
    seq_spec = pl.BlockSpec((1, INNER, HIDDEN), lambda b: (b, 0, 0))
    return pl.pallas_call(
        coattn_kernel,
        out_shape=jax.ShapeDtypeStruct((B, INNER, 2 * HIDDEN), jnp.float32),
        grid=(B,),
        in_specs=[
            seq_spec,
            seq_spec,
            pl.BlockSpec((8, HIDDEN, HIDDEN), lambda b: (0, 0, 0)),  # resident
            pl.BlockSpec((8, HIDDEN), lambda b: (0, 0)),
            pl.BlockSpec((2, HIDDEN), lambda b: (0, 0)),
            pl.BlockSpec((2, HIDDEN), lambda b: (0, 0)),
        ],
        out_specs=pl.BlockSpec((1, INNER, 2 * HIDDEN), lambda b: (b, 0, 0)),
        compiler_params=pltpu.CompilerParams(
            dimension_semantics=("parallel",)),
    )(xeeg, xeog, p["attn_w"], p["attn_b"], p["ln_g"], p["ln_b"])


# ----------------------------------------------------------------------------
# Kernel B: fused fc_out head.
#   grid over 256-wide column tiles of Linear(7424, 1024); per step:
#     h_tile = ReLU(x @ W1[:, tile] + b1[tile])          (bf16 weights, f32 acc)
#     logits += h_tile @ W2[tile, :]
#   last step: + b2, Softmax(dim=1).
# The weight stream is double-buffered by BlockSpec; x stays resident.
# ----------------------------------------------------------------------------
def fc_head_kernel(x_ref, w1_ref, b1_ref, w2_ref, b2_ref, o_ref, acc_ref):
    t = pl.program_id(0)

    @pl.when(t == 0)
    def _():
        acc_ref[...] = jnp.zeros_like(acc_ref)

    xb = x_ref[...].astype(jnp.bfloat16)                       # (B, 7424)
    h = (jnp.dot(xb, w1_ref[...], preferred_element_type=jnp.float32)
         + b1_ref[...])                                        # (B, TN)
    h = jnp.maximum(h, 0.0)
    acc_ref[...] += jnp.dot(h, w2_ref[...],
                            preferred_element_type=jnp.float32)

    @pl.when(t == pl.num_programs(0) - 1)
    def _():
        logits = acc_ref[...] + b2_ref[...]
        m = jnp.max(logits, axis=-1, keepdims=True)
        e = jnp.exp(logits - m)
        o_ref[...] = e / jnp.sum(e, axis=-1, keepdims=True)


def fc_head(x, p):
    B = x.shape[0]
    n_tiles = FC_INNER // TN
    return pl.pallas_call(
        fc_head_kernel,
        out_shape=jax.ShapeDtypeStruct((B, NUM_CLASSES), jnp.float32),
        grid=(n_tiles,),
        in_specs=[
            pl.BlockSpec((B, D_MODEL), lambda t: (0, 0)),       # resident acts
            pl.BlockSpec((D_MODEL, TN), lambda t: (0, t)),      # bf16 weight
            pl.BlockSpec((1, TN), lambda t: (0, t)),
            pl.BlockSpec((TN, NUM_CLASSES), lambda t: (t, 0)),
            pl.BlockSpec((1, NUM_CLASSES), lambda t: (0, 0)),
        ],
        out_specs=pl.BlockSpec((B, NUM_CLASSES), lambda t: (0, 0)),
        scratch_shapes=[pltpu.VMEM((B, NUM_CLASSES), jnp.float32)],
        compiler_params=pltpu.CompilerParams(
            dimension_semantics=("arbitrary",)),
    )(x, p["w1"], p["b1"], p["w2"], p["b2"])


# ----------------------------------------------------------------------------
# Full forward
# ----------------------------------------------------------------------------
def eeg_sleep_vilbert_forward(x_list, params):
    xeeg6, xeog6 = x_list
    # x[i][:, :, :, 0, 1:, :] -> (b, outer, f, k, inner)
    xeeg = xeeg6[:, :, :, 0, 1:, :]
    xeog = xeog6[:, :, :, 0, 1:, :]
    b, outer, f, k, inner = xeeg.shape
    assert inner == INNER and f * k == HIDDEN

    # einops 'b outer f k inner -> (b outer) inner (f k)'
    xeeg = jnp.transpose(xeeg, (0, 1, 4, 2, 3)).reshape(b * outer, inner, f * k)
    xeog = jnp.transpose(xeog, (0, 1, 4, 2, 3)).reshape(b * outer, inner, f * k)

    # MyViLBERT co-attention; output already in cat(dim=2) layout (B, 29, 256)
    feat = vilbert_coattn(xeeg, xeog, params)
    # einops 'b inner f -> b (inner f)' — contiguous, free reshape
    flat = feat.reshape(b * outer, D_MODEL)

    # fc_out (Dropout is identity in eval mode)
    return fc_head(flat, params)                               # (B, 5)


# ----------------------------------------------------------------------------
# Deterministic synthetic parameters
# ----------------------------------------------------------------------------
def init_params(key):
    ks = jax.random.split(key, 3)

    def nrm(k, shape, scale=0.02):
        return (scale * jax.random.normal(k, shape)).astype(jnp.float32)

    return {
        # co-attention: [Wq_e, Wk_e, Wv_e, Wo_e, Wq_o, Wk_o, Wv_o, Wo_o]
        "attn_w": nrm(ks[0], (8, HIDDEN, HIDDEN), 0.05),
        "attn_b": jnp.zeros((8, HIDDEN), jnp.float32),
        "ln_g": jnp.ones((2, HIDDEN), jnp.float32),
        "ln_b": jnp.zeros((2, HIDDEN), jnp.float32),
        # fc_out: big weight stored in bf16 (f32 accumulation in-kernel)
        "w1": nrm(ks[1], (D_MODEL, FC_INNER)).astype(jnp.bfloat16),
        "b1": jnp.zeros((1, FC_INNER), jnp.float32),
        "w2": nrm(ks[2], (FC_INNER, NUM_CLASSES)),
        "b2": jnp.zeros((1, NUM_CLASSES), jnp.float32),
    }


if __name__ == "__main__":
    # x[i]: (b, outer, f, 1, k+1, inner) with f*k = 128, inner = 29
    b, outer, f, d3, kp1, inner = 1, 2, 2, 1, 65, 29
    key = jax.random.PRNGKey(0)
    k0, k1, kparam = jax.random.split(key, 3)
    x0 = jax.random.normal(k0, (b, outer, f, d3, kp1, inner), dtype=jnp.float32)
    x1 = jax.random.normal(k1, (b, outer, f, d3, kp1, inner), dtype=jnp.float32)
    params = init_params(kparam)

    out = eeg_sleep_vilbert_forward([x0, x1], params)
    out = jax.block_until_ready(out)

    assert out.shape == (b * outer, NUM_CLASSES)
    assert bool(jnp.all(jnp.isfinite(out)))
    # rows of a softmax must sum to 1
    assert bool(jnp.allclose(jnp.sum(out, axis=1), 1.0, atol=1e-4))
    print("KERNEL_OK")
</pallas_src>

<mosaic_0001>
module attributes {stable_mosaic.version = 11 : i64} {
  func.func @coattn_kernel(%arg0: i32, %arg1: memref<1x29x128xf32, #tpu.memory_space<vmem>>, %arg2: memref<1x29x128xf32, #tpu.memory_space<vmem>>, %arg3: memref<8x128x128xf32, #tpu.memory_space<vmem>>, %arg4: memref<8x128xf32, #tpu.memory_space<vmem>>, %arg5: memref<2x128xf32, #tpu.memory_space<vmem>>, %arg6: memref<2x128xf32, #tpu.memory_space<vmem>>, %arg7: memref<1x29x256xf32, #tpu.memory_space<vmem>>) attributes {dimension_semantics = [#tpu.dimension_semantics<parallel>], iteration_bounds = array<i64: 2>, scalar_prefetch = 0 : i64, scratch_operands = 0 : i64, tpu.core_type = #tpu.core_type<tc>, window_params = [{transform_indices = @transform_0, window_bounds = array<i64: 1, 29, 128>}, {transform_indices = @transform_1, window_bounds = array<i64: 1, 29, 128>}, {pipeline_mode = #tpu.pipeline_mode<synchronous>, transform_indices = @transform_2, window_bounds = array<i64: 8, 128, 128>}, {pipeline_mode = #tpu.pipeline_mode<synchronous>, transform_indices = @transform_3, window_bounds = array<i64: 8, 128>}, {pipeline_mode = #tpu.pipeline_mode<synchronous>, transform_indices = @transform_4, window_bounds = array<i64: 2, 128>}, {pipeline_mode = #tpu.pipeline_mode<synchronous>, transform_indices = @transform_5, window_bounds = array<i64: 2, 128>}, {transform_indices = @transform_6, window_bounds = array<i64: 1, 29, 256>}]} {
    %c0 = arith.constant 0 : index
    %c0_0 = arith.constant 0 : index
    %c0_1 = arith.constant 0 : index
    %0 = vector.load %arg1[%c0, %c0_0, %c0_1] : memref<1x29x128xf32, #tpu.memory_space<vmem>>, vector<1x29x128xf32>
    %1 = vector.shape_cast %0 : vector<1x29x128xf32> to vector<29x128xf32>
    %c0_2 = arith.constant 0 : index
    %c0_3 = arith.constant 0 : index
    %c0_4 = arith.constant 0 : index
    %2 = vector.load %arg2[%c0_2, %c0_3, %c0_4] : memref<1x29x128xf32, #tpu.memory_space<vmem>>, vector<1x29x128xf32>
    %3 = vector.shape_cast %2 : vector<1x29x128xf32> to vector<29x128xf32>
    %c0_5 = arith.constant 0 : index
    %c0_6 = arith.constant 0 : index
    %c0_7 = arith.constant 0 : index
    %4 = vector.load %arg3[%c0_5, %c0_6, %c0_7] : memref<8x128x128xf32, #tpu.memory_space<vmem>>, vector<1x128x128xf32>
    %5 = vector.shape_cast %4 : vector<1x128x128xf32> to vector<128x128xf32>
    %cst = arith.constant dense<0.000000e+00> : vector<29x128xf32>
    %6 = tpu.matmul %1, %5, %cst {dimension_numbers = #tpu.dot_dimension_numbers<[1], [0], [0], [1], [0, 0, 1, 1], [], []>} : vector<29x128xf32>, vector<128x128xf32>, vector<29x128xf32> -> vector<29x128xf32>
    %c0_8 = arith.constant 0 : index
    %c0_9 = arith.constant 0 : index
    %7 = vector.load %arg4[%c0_8, %c0_9] : memref<8x128xf32, #tpu.memory_space<vmem>>, vector<1x128xf32>
    %8 = vector.broadcast %7 : vector<1x128xf32> to vector<29x128xf32>
    %9 = arith.addf %6, %8 : vector<29x128xf32>
    %c1 = arith.constant 1 : index
    %c0_10 = arith.constant 0 : index
    %c0_11 = arith.constant 0 : index
    %10 = vector.load %arg3[%c1, %c0_10, %c0_11] : memref<8x128x128xf32, #tpu.memory_space<vmem>>, vector<1x128x128xf32>
    %11 = vector.shape_cast %10 : vector<1x128x128xf32> to vector<128x128xf32>
    %cst_12 = arith.constant dense<0.000000e+00> : vector<29x128xf32>
    %12 = tpu.matmul %1, %11, %cst_12 {dimension_numbers = #tpu.dot_dimension_numbers<[1], [0], [0], [1], [0, 0, 1, 1], [], []>} : vector<29x128xf32>, vector<128x128xf32>, vector<29x128xf32> -> vector<29x128xf32>
    %c1_13 = arith.constant 1 : index
    %c0_14 = arith.constant 0 : index
    %13 = vector.load %arg4[%c1_13, %c0_14] : memref<8x128xf32, #tpu.memory_space<vmem>>, vector<1x128xf32>
    %14 = vector.broadcast %13 : vector<1x128xf32> to vector<29x128xf32>
    %15 = arith.addf %12, %14 : vector<29x128xf32>
    %c2 = arith.constant 2 : index
    %c0_15 = arith.constant 0 : index
    %c0_16 = arith.constant 0 : index
    %16 = vector.load %arg3[%c2, %c0_15, %c0_16] : memref<8x128x128xf32, #tpu.memory_space<vmem>>, vector<1x128x128xf32>
    %17 = vector.shape_cast %16 : vector<1x128x128xf32> to vector<128x128xf32>
    %cst_17 = arith.constant dense<0.000000e+00> : vector<29x128xf32>
    %18 = tpu.matmul %1, %17, %cst_17 {dimension_numbers = #tpu.dot_dimension_numbers<[1], [0], [0], [1], [0, 0, 1, 1], [], []>} : vector<29x128xf32>, vector<128x128xf32>, vector<29x128xf32> -> vector<29x128xf32>
    %c2_18 = arith.constant 2 : index
    %c0_19 = arith.constant 0 : index
    %19 = vector.load %arg4[%c2_18, %c0_19] : memref<8x128xf32, #tpu.memory_space<vmem>>, vector<1x128xf32>
    %20 = vector.broadcast %19 : vector<1x128xf32> to vector<29x128xf32>
    %21 = arith.addf %18, %20 : vector<29x128xf32>
    %c4 = arith.constant 4 : index
    %c0_20 = arith.constant 0 : index
    %c0_21 = arith.constant 0 : index
    %22 = vector.load %arg3[%c4, %c0_20, %c0_21] : memref<8x128x128xf32, #tpu.memory_space<vmem>>, vector<1x128x128xf32>
    %23 = vector.shape_cast %22 : vector<1x128x128xf32> to vector<128x128xf32>
    %cst_22 = arith.constant dense<0.000000e+00> : vector<29x128xf32>
    %24 = tpu.matmul %3, %23, %cst_22 {dimension_numbers = #tpu.dot_dimension_numbers<[1], [0], [0], [1], [0, 0, 1, 1], [], []>} : vector<29x128xf32>, vector<128x128xf32>, vector<29x128xf32> -> vector<29x128xf32>
    %c4_23 = arith.constant 4 : index
    %c0_24 = arith.constant 0 : index
    %25 = vector.load %arg4[%c4_23, %c0_24] : memref<8x128xf32, #tpu.memory_space<vmem>>, vector<1x128xf32>
    %26 = vector.broadcast %25 : vector<1x128xf32> to vector<29x128xf32>
    %27 = arith.addf %24, %26 : vector<29x128xf32>
    %c5 = arith.constant 5 : index
    %c0_25 = arith.constant 0 : index
    %c0_26 = arith.constant 0 : index
    %28 = vector.load %arg3[%c5, %c0_25, %c0_26] : memref<8x128x128xf32, #tpu.memory_space<vmem>>, vector<1x128x128xf32>
    %29 = vector.shape_cast %28 : vector<1x128x128xf32> to vector<128x128xf32>
    %cst_27 = arith.constant dense<0.000000e+00> : vector<29x128xf32>
    %30 = tpu.matmul %3, %29, %cst_27 {dimension_numbers = #tpu.dot_dimension_numbers<[1], [0], [0], [1], [0, 0, 1, 1], [], []>} : vector<29x128xf32>, vector<128x128xf32>, vector<29x128xf32> -> vector<29x128xf32>
    %c5_28 = arith.constant 5 : index
    %c0_29 = arith.constant 0 : index
    %31 = vector.load %arg4[%c5_28, %c0_29] : memref<8x128xf32, #tpu.memory_space<vmem>>, vector<1x128xf32>
    %32 = vector.broadcast %31 : vector<1x128xf32> to vector<29x128xf32>
    %33 = arith.addf %30, %32 : vector<29x128xf32>
    %c6 = arith.constant 6 : index
    %c0_30 = arith.constant 0 : index
    %c0_31 = arith.constant 0 : index
    %34 = vector.load %arg3[%c6, %c0_30, %c0_31] : memref<8x128x128xf32, #tpu.memory_space<vmem>>, vector<1x128x128xf32>
    %35 = vector.shape_cast %34 : vector<1x128x128xf32> to vector<128x128xf32>
    %cst_32 = arith.constant dense<0.000000e+00> : vector<29x128xf32>
    %36 = tpu.matmul %3, %35, %cst_32 {dimension_numbers = #tpu.dot_dimension_numbers<[1], [0], [0], [1], [0, 0, 1, 1], [], []>} : vector<29x128xf32>, vector<128x128xf32>, vector<29x128xf32> -> vector<29x128xf32>
    %c6_33 = arith.constant 6 : index
    %c0_34 = arith.constant 0 : index
    %37 = vector.load %arg4[%c6_33, %c0_34] : memref<8x128xf32, #tpu.memory_space<vmem>>, vector<1x128xf32>
    %38 = vector.broadcast %37 : vector<1x128xf32> to vector<29x128xf32>
    %39 = arith.addf %36, %38 : vector<29x128xf32>
    %cst_35 = arith.constant dense<0.000000e+00> : vector<29x29xf32>
    %40 = tpu.matmul %9, %33, %cst_35 {dimension_numbers = #tpu.dot_dimension_numbers<[1], [1], [0], [0], [0, 0, 1, 0], [], []>} : vector<29x128xf32>, vector<29x128xf32>, vector<29x29xf32> -> vector<29x29xf32>
    %cst_36 = arith.constant 0.0883883461 : f32
    %41 = vector.broadcast %cst_36 : f32 to vector<29x29xf32>
    %42 = arith.mulf %40, %41 : vector<29x29xf32>
    %cst_37 = arith.constant dense<0xFF800000> : vector<29xf32>
    %43 = vector.multi_reduction <maximumf>, %42, %cst_37 [1] : vector<29x29xf32> to vector<29xf32>
    %44 = vector.shape_cast %43 : vector<29xf32> to vector<29x1xf32>
    %45 = vector.broadcast %44 : vector<29x1xf32> to vector<29x29xf32>
    %46 = arith.subf %42, %45 : vector<29x29xf32>
    %47 = math.exp %46 : vector<29x29xf32>
    %cst_38 = arith.constant dense<0.000000e+00> : vector<29xf32>
    %48 = vector.multi_reduction <add>, %47, %cst_38 [1] : vector<29x29xf32> to vector<29xf32>
    %49 = vector.shape_cast %48 : vector<29xf32> to vector<29x1xf32>
    %50 = tpu.reciprocal %49 {approx = true} : vector<29x1xf32> -> vector<29x1xf32>
    %51 = vector.broadcast %50 : vector<29x1xf32> to vector<29x29xf32>
    %52 = arith.mulf %47, %51 : vector<29x29xf32>
    %cst_39 = arith.constant dense<0.000000e+00> : vector<29x128xf32>
    %53 = tpu.matmul %52, %39, %cst_39 {dimension_numbers = #tpu.dot_dimension_numbers<[1], [0], [0], [1], [0, 0, 1, 1], [], []>} : vector<29x29xf32>, vector<29x128xf32>, vector<29x128xf32> -> vector<29x128xf32>
    %cst_40 = arith.constant dense<0.000000e+00> : vector<29x29xf32>
    %54 = tpu.matmul %27, %15, %cst_40 {dimension_numbers = #tpu.dot_dimension_numbers<[1], [1], [0], [0], [0, 0, 1, 0], [], []>} : vector<29x128xf32>, vector<29x128xf32>, vector<29x29xf32> -> vector<29x29xf32>
    %cst_41 = arith.constant 0.0883883461 : f32
    %55 = vector.broadcast %cst_41 : f32 to vector<29x29xf32>
    %56 = arith.mulf %54, %55 : vector<29x29xf32>
    %cst_42 = arith.constant dense<0xFF800000> : vector<29xf32>
    %57 = vector.multi_reduction <maximumf>, %56, %cst_42 [1] : vector<29x29xf32> to vector<29xf32>
    %58 = vector.shape_cast %57 : vector<29xf32> to vector<29x1xf32>
    %59 = vector.broadcast %58 : vector<29x1xf32> to vector<29x29xf32>
    %60 = arith.subf %56, %59 : vector<29x29xf32>
    %61 = math.exp %60 : vector<29x29xf32>
    %cst_43 = arith.constant dense<0.000000e+00> : vector<29xf32>
    %62 = vector.multi_reduction <add>, %61, %cst_43 [1] : vector<29x29xf32> to vector<29xf32>
    %63 = vector.shape_cast %62 : vector<29xf32> to vector<29x1xf32>
    %64 = tpu.reciprocal %63 {approx = true} : vector<29x1xf32> -> vector<29x1xf32>
    %65 = vector.broadcast %64 : vector<29x1xf32> to vector<29x29xf32>
    %66 = arith.mulf %61, %65 : vector<29x29xf32>
    %cst_44 = arith.constant dense<0.000000e+00> : vector<29x128xf32>
    %67 = tpu.matmul %66, %21, %cst_44 {dimension_numbers = #tpu.dot_dimension_numbers<[1], [0], [0], [1], [0, 0, 1, 1], [], []>} : vector<29x29xf32>, vector<29x128xf32>, vector<29x128xf32> -> vector<29x128xf32>
    %c3 = arith.constant 3 : index
    %c0_45 = arith.constant 0 : index
    %c0_46 = arith.constant 0 : index
    %68 = vector.load %arg3[%c3, %c0_45, %c0_46] : memref<8x128x128xf32, #tpu.memory_space<vmem>>, vector<1x128x128xf32>
    %69 = vector.shape_cast %68 : vector<1x128x128xf32> to vector<128x128xf32>
    %cst_47 = arith.constant dense<0.000000e+00> : vector<29x128xf32>
    %70 = tpu.matmul %53, %69, %cst_47 {dimension_numbers = #tpu.dot_dimension_numbers<[1], [0], [0], [1], [0, 0, 1, 1], [], []>} : vector<29x128xf32>, vector<128x128xf32>, vector<29x128xf32> -> vector<29x128xf32>
    %71 = arith.addf %1, %70 : vector<29x128xf32>
    %c3_48 = arith.constant 3 : index
    %c0_49 = arith.constant 0 : index
    %72 = vector.load %arg4[%c3_48, %c0_49] : memref<8x128xf32, #tpu.memory_space<vmem>>, vector<1x128xf32>
    %73 = vector.broadcast %72 : vector<1x128xf32> to vector<29x128xf32>
    %74 = arith.addf %71, %73 : vector<29x128xf32>
    %c7 = arith.constant 7 : index
    %c0_50 = arith.constant 0 : index
    %c0_51 = arith.constant 0 : index
    %75 = vector.load %arg3[%c7, %c0_50, %c0_51] : memref<8x128x128xf32, #tpu.memory_space<vmem>>, vector<1x128x128xf32>
    %76 = vector.shape_cast %75 : vector<1x128x128xf32> to vector<128x128xf32>
    %cst_52 = arith.constant dense<0.000000e+00> : vector<29x128xf32>
    %77 = tpu.matmul %67, %76, %cst_52 {dimension_numbers = #tpu.dot_dimension_numbers<[1], [0], [0], [1], [0, 0, 1, 1], [], []>} : vector<29x128xf32>, vector<128x128xf32>, vector<29x128xf32> -> vector<29x128xf32>
    %78 = arith.addf %3, %77 : vector<29x128xf32>
    %c7_53 = arith.constant 7 : index
    %c0_54 = arith.constant 0 : index
    %79 = vector.load %arg4[%c7_53, %c0_54] : memref<8x128xf32, #tpu.memory_space<vmem>>, vector<1x128xf32>
    %80 = vector.broadcast %79 : vector<1x128xf32> to vector<29x128xf32>
    %81 = arith.addf %78, %80 : vector<29x128xf32>
    %c0_55 = arith.constant 0 : index
    %c0_56 = arith.constant 0 : index
    %82 = vector.load %arg5[%c0_55, %c0_56] : memref<2x128xf32, #tpu.memory_space<vmem>>, vector<1x128xf32>
    %c0_57 = arith.constant 0 : index
    %c0_58 = arith.constant 0 : index
    %83 = vector.load %arg6[%c0_57, %c0_58] : memref<2x128xf32, #tpu.memory_space<vmem>>, vector<1x128xf32>
    %cst_59 = arith.constant dense<0.000000e+00> : vector<29xf32>
    %84 = vector.multi_reduction <add>, %74, %cst_59 [1] : vector<29x128xf32> to vector<29xf32>
    %85 = vector.shape_cast %84 : vector<29xf32> to vector<29x1xf32>
    %cst_60 = arith.constant 1.280000e+02 : f32
    %86 = vector.broadcast %cst_60 : f32 to vector<29x1xf32>
    %87 = arith.divf %85, %86 : vector<29x1xf32>
    %88 = vector.broadcast %87 : vector<29x1xf32> to vector<29x128xf32>
    %89 = arith.subf %74, %88 : vector<29x128xf32>
    %90 = vector.broadcast %87 : vector<29x1xf32> to vector<29x128xf32>
    %91 = arith.subf %74, %90 : vector<29x128xf32>
    %92 = arith.mulf %89, %91 : vector<29x128xf32>
    %cst_61 = arith.constant dense<0.000000e+00> : vector<29xf32>
    %93 = vector.multi_reduction <add>, %92, %cst_61 [1] : vector<29x128xf32> to vector<29xf32>
    %94 = vector.shape_cast %93 : vector<29xf32> to vector<29x1xf32>
    %cst_62 = arith.constant 1.280000e+02 : f32
    %95 = vector.broadcast %cst_62 : f32 to vector<29x1xf32>
    %96 = arith.divf %94, %95 : vector<29x1xf32>
    %97 = vector.broadcast %87 : vector<29x1xf32> to vector<29x128xf32>
    %98 = arith.subf %74, %97 : vector<29x128xf32>
    %cst_63 = arith.constant 9.99999974E-6 : f32
    %99 = vector.broadcast %cst_63 : f32 to vector<29x1xf32>
    %100 = arith.addf %96, %99 : vector<29x1xf32>
    %101 = math.rsqrt %100 : vector<29x1xf32>
    %102 = vector.broadcast %101 : vector<29x1xf32> to vector<29x128xf32>
    %103 = arith.mulf %98, %102 : vector<29x128xf32>
    %104 = vector.broadcast %82 : vector<1x128xf32> to vector<29x128xf32>
    %105 = arith.mulf %103, %104 : vector<29x128xf32>
    %106 = vector.broadcast %83 : vector<1x128xf32> to vector<29x128xf32>
    %107 = arith.addf %105, %106 : vector<29x128xf32>
    %c0_64 = arith.constant 0 : index
    %c0_65 = arith.constant 0 : index
    %c0_66 = arith.constant 0 : index
    %108 = vector.load %arg7[%c0_64, %c0_65, %c0_66] : memref<1x29x256xf32, #tpu.memory_space<vmem>>, vector<1x29x128xf32>
    %109 = vector.shape_cast %108 : vector<1x29x128xf32> to vector<29x128xf32>
    %110 = vector.shape_cast %107 : vector<29x128xf32> to vector<1x29x128xf32>
    tpu.vector_store %arg7[%c0_64, %c0_65, %c0_66], %110 {strides = array<i32>} : memref<1x29x256xf32, #tpu.memory_space<vmem>>, vector<1x29x128xf32>,
    %c1_67 = arith.constant 1 : index
    %c0_68 = arith.constant 0 : index
    %111 = vector.load %arg5[%c1_67, %c0_68] : memref<2x128xf32, #tpu.memory_space<vmem>>, vector<1x128xf32>
    %c1_69 = arith.constant 1 : index
    %c0_70 = arith.constant 0 : index
    %112 = vector.load %arg6[%c1_69, %c0_70] : memref<2x128xf32, #tpu.memory_space<vmem>>, vector<1x128xf32>
    %cst_71 = arith.constant dense<0.000000e+00> : vector<29xf32>
    %113 = vector.multi_reduction <add>, %81, %cst_71 [1] : vector<29x128xf32> to vector<29xf32>
    %114 = vector.shape_cast %113 : vector<29xf32> to vector<29x1xf32>
    %cst_72 = arith.constant 1.280000e+02 : f32
    %115 = vector.broadcast %cst_72 : f32 to vector<29x1xf32>
    %116 = arith.divf %114, %115 : vector<29x1xf32>
    %117 = vector.broadcast %116 : vector<29x1xf32> to vector<29x128xf32>
    %118 = arith.subf %81, %117 : vector<29x128xf32>
    %119 = vector.broadcast %116 : vector<29x1xf32> to vector<29x128xf32>
    %120 = arith.subf %81, %119 : vector<29x128xf32>
    %121 = arith.mulf %118, %120 : vector<29x128xf32>
    %cst_73 = arith.constant dense<0.000000e+00> : vector<29xf32>
    %122 = vector.multi_reduction <add>, %121, %cst_73 [1] : vector<29x128xf32> to vector<29xf32>
    %123 = vector.shape_cast %122 : vector<29xf32> to vector<29x1xf32>
    %cst_74 = arith.constant 1.280000e+02 : f32
    %124 = vector.broadcast %cst_74 : f32 to vector<29x1xf32>
    %125 = arith.divf %123, %124 : vector<29x1xf32>
    %126 = vector.broadcast %116 : vector<29x1xf32> to vector<29x128xf32>
    %127 = arith.subf %81, %126 : vector<29x128xf32>
    %cst_75 = arith.constant 9.99999974E-6 : f32
    %128 = vector.broadcast %cst_75 : f32 to vector<29x1xf32>
    %129 = arith.addf %125, %128 : vector<29x1xf32>
    %130 = math.rsqrt %129 : vector<29x1xf32>
    %131 = vector.broadcast %130 : vector<29x1xf32> to vector<29x128xf32>
    %132 = arith.mulf %127, %131 : vector<29x128xf32>
    %133 = vector.broadcast %111 : vector<1x128xf32> to vector<29x128xf32>
    %134 = arith.mulf %132, %133 : vector<29x128xf32>
    %135 = vector.broadcast %112 : vector<1x128xf32> to vector<29x128xf32>
    %136 = arith.addf %134, %135 : vector<29x128xf32>
    %c0_76 = arith.constant 0 : index
    %c0_77 = arith.constant 0 : index
    %c128 = arith.constant 128 : index
    %137 = vector.load %arg7[%c0_76, %c0_77, %c128] : memref<1x29x256xf32, #tpu.memory_space<vmem>>, vector<1x29x128xf32>
    %138 = vector.shape_cast %137 : vector<1x29x128xf32> to vector<29x128xf32>
    %139 = vector.shape_cast %136 : vector<29x128xf32> to vector<1x29x128xf32>
    tpu.vector_store %arg7[%c0_76, %c0_77, %c128], %139 {strides = array<i32>} : memref<1x29x256xf32, #tpu.memory_space<vmem>>, vector<1x29x128xf32>,
    return
  }
  func.func @transform_0(%arg0: i32) -> (i32, i32, i32) {
    %c0_i32 = arith.constant 0 : i32
    %c0_i32_0 = arith.constant 0 : i32
    %c0_i32_1 = arith.constant 0 : i32
    return %arg0, %c0_i32, %c0_i32_0 : i32, i32, i32
  }
  func.func @transform_1(%arg0: i32) -> (i32, i32, i32) {
    %c0_i32 = arith.constant 0 : i32
    %c0_i32_0 = arith.constant 0 : i32
    %c0_i32_1 = arith.constant 0 : i32
    return %arg0, %c0_i32, %c0_i32_0 : i32, i32, i32
  }
  func.func @transform_2(%arg0: i32) -> (i32, i32, i32) {
    %c0_i32 = arith.constant 0 : i32
    %c0_i32_0 = arith.constant 0 : i32
    %c0_i32_1 = arith.constant 0 : i32
    %c0_i32_2 = arith.constant 0 : i32
    return %c0_i32, %c0_i32_0, %c0_i32_1 : i32, i32, i32
  }
  func.func @transform_3(%arg0: i32) -> (i32, i32) {
    %c0_i32 = arith.constant 0 : i32
    %c0_i32_0 = arith.constant 0 : i32
    %c0_i32_1 = arith.constant 0 : i32
    return %c0_i32, %c0_i32_0 : i32, i32
  }
  func.func @transform_4(%arg0: i32) -> (i32, i32) {
    %c0_i32 = arith.constant 0 : i32
    %c0_i32_0 = arith.constant 0 : i32
    %c0_i32_1 = arith.constant 0 : i32
    return %c0_i32, %c0_i32_0 : i32, i32
  }
  func.func @transform_5(%arg0: i32) -> (i32, i32) {
    %c0_i32 = arith.constant 0 : i32
    %c0_i32_0 = arith.constant 0 : i32
    %c0_i32_1 = arith.constant 0 : i32
    return %c0_i32, %c0_i32_0 : i32, i32
  }
  func.func @transform_6(%arg0: i32) -> (i32, i32, i32) {
    %c0_i32 = arith.constant 0 : i32
    %c0_i32_0 = arith.constant 0 : i32
    %c0_i32_1 = arith.constant 0 : i32
    return %arg0, %c0_i32, %c0_i32_0 : i32, i32, i32
  }
}

</mosaic_0001>

<llo_original>
// kernel: tpu_custom_call.1
$region0: #{tpu_custom_call.1}
  #allocation0 [shape = 'u32[]', space=smem, size = 0x4, offset = 0x4, fixed_abs, tag = 'smem constant byte address 0x4 - core index']
  #allocation1 [shape = 'u32[144,128]{1,0:T(1,128)}', space=vmem, size = 0x12000, scoped, tag = 'internal scratch']
  %s0 = inlined_call_operand.vmem [shape: f32[2,29,128], index: 0, kind: input, shape index: {}]
  %s1 = inlined_call_operand.vmem [shape: f32[2,29,128], index: 1, kind: input, shape index: {}]
  %s2 = inlined_call_operand.hbm [shape: f32[8,128,128], index: 2, kind: input, shape index: {}]
  %s3 = inlined_call_operand.vmem [shape: f32[8,128], index: 3, kind: input, shape index: {}]
  %s4 = inlined_call_operand.vmem [shape: f32[2,128], index: 4, kind: input, shape index: {}]
  %s5 = inlined_call_operand.vmem [shape: f32[2,128], index: 5, kind: input, shape index: {}]
  %s6 = inlined_call_operand.vmem [shape: f32[2,29,256], index: 6, kind: output, shape index: {}]
  %s7 = sld [smem:[#allocation0]]
  $region61: #{tpu_custom_call.1} parent=0
    _
  %s9 = ssub.s32 1, %s7
  %s10 = scalar_select 0, %s9, %s7
  $region1: #{tpu_custom_call.1} parent=0
    #allocation2 [shape = 'u8[524288]{0}', space=vmem, size = 0x80000, scoped, tag = 'input window, operand 2, single buffered']
    #allocation3 [shape = 's32[2]{0}', space=sflag, size = 0x8, scoped, tag = 'scoped memory for tpu_custom_call.1']
    %11 = vsyncpa [#allocation3], 0
    loop: start=0, step=1, limit=4
    $region2: #{tpu_custom_call.1} parent=1 // loop_pre_header
      _
    $region3: #{tpu_custom_call.1} parent=1 // loop_header
      %s13 = sphi 0, %s17
      %p14 = scmp.ge.s32.totalorder %s13, 4
      %s23 = sphi 0, %s25
      %s26 = sphi 0, %s23
      %s27 = sphi 0, %s26
      %s43 = sphi 0, %s27
      %s49 = sphi 0, %s51
      %s52 = sphi 0, %s49
      %s53 = sphi 0, %s52
      %s69 = sphi 0, %s53
      %s73 = sphi 0, %s73
      %s75 = sphi 0, %s73
      %s76 = sphi 0, %s75
      %s90 = sphi 0, %s76
      %s94 = sphi 0, %s94
      %s96 = sphi 0, %s94
      %s97 = sphi 0, %s96
      %s111 = sphi 0, %s97
      %s115 = sphi 0, %s115
      %s117 = sphi 0, %s115
      %s118 = sphi 0, %s117
      %s132 = sphi 0, %s118
      %s136 = sphi 0, %s136
      %s138 = sphi 0, %s136
      %s139 = sphi 0, %s138
      %s153 = sphi 0, %s139
      %s159 = sphi 0, %s161
      %s162 = sphi 0, %s159
      %s163 = sphi 0, %s162
      %s179 = sphi 0, %s163
    $region4: #{tpu_custom_call.1} parent=1 // loop_header_branch
      %16 = sbr.rel (%p14) target = $region8
    $region5: #{tpu_custom_call.1} parent=1 // loop_body
      %s18 = ssub.s32 %s13, 1
      %s19 = ssub.s32 %s13, 2
      %s20 = sadd.s32 %s13, 1
      %s21 = ssub.s32 %s13, %s20
      %p22 = scmp.eq.s32.totalorder %s21, 0
      %s24 = sadd.s32 %s23, 1
      %s25 = scalar_select %p22, %s23, %s24
      %p28 = pneg %p22
      %p29 = scmp.eq.s32.totalorder %s13, 1
      %p30 = por %p28, %p29
      %p31 = scmp.ne.s32.totalorder %s23, %s26
      %p32 = scmp.eq.s32.totalorder %s13, 0
      %p33 = por %p31, %p32
      %p34 = scmp.ne.s32.totalorder %s23, %s26
      %p35 = scmp.eq.s32.totalorder %s18, 1
      %p36 = por %p34, %p35
      %p37 = scmp.ne.s32.totalorder %s26, %s27
      %p38 = scmp.eq.s32.totalorder %s18, 0
      %p39 = por %p37, %p38
      %p40 = scmp.ne.s32.totalorder %s26, %s27
      %p41 = scmp.eq.s32.totalorder %s19, 1
      %p42 = por %p40, %p41
      %p44 = scmp.ne.s32.totalorder %s27, %s43
      %p45 = scmp.eq.s32.totalorder %s19, 0
      %p46 = por %p44, %p45
      %s47 = ssub.s32 %s13, %s20
      %p48 = scmp.eq.s32.totalorder %s47, 0
      %s50 = sadd.s32 %s49, 1
      %s51 = scalar_select %p48, %s49, %s50
      %p54 = pneg %p48
      %p55 = scmp.eq.s32.totalorder %s13, 1
      %p56 = por %p54, %p55
      %p57 = scmp.ne.s32.totalorder %s49, %s52
      %p58 = scmp.eq.s32.totalorder %s13, 0
      %p59 = por %p57, %p58
      %p60 = scmp.ne.s32.totalorder %s49, %s52
      %p61 = scmp.eq.s32.totalorder %s18, 1
      %p62 = por %p60, %p61
      %p63 = scmp.ne.s32.totalorder %s52, %s53
      %p64 = scmp.eq.s32.totalorder %s18, 0
      %p65 = por %p63, %p64
      %p66 = scmp.ne.s32.totalorder %s52, %s53
      %p67 = scmp.eq.s32.totalorder %s19, 1
      %p68 = por %p66, %p67
      %p70 = scmp.ne.s32.totalorder %s53, %s69
      %p71 = scmp.eq.s32.totalorder %s19, 0
      %p72 = por %p70, %p71
      %s74 = sadd.s32 %s73, 1
      %p77 = scmp.eq.s32.totalorder %s13, 1
      %p78 = scmp.ne.s32.totalorder %s73, %s75
      %p79 = scmp.eq.s32.totalorder %s13, 0
      %p80 = por %p78, %p79
      %p81 = scmp.ne.s32.totalorder %s73, %s75
      %p82 = scmp.eq.s32.totalorder %s18, 1
      %p83 = por %p81, %p82
      %p84 = scmp.ne.s32.totalorder %s75, %s76
      %p85 = scmp.eq.s32.totalorder %s18, 0
      %p86 = por %p84, %p85
      %p87 = scmp.ne.s32.totalorder %s75, %s76
      %p88 = scmp.eq.s32.totalorder %s19, 1
      %p89 = por %p87, %p88
      %p91 = scmp.ne.s32.totalorder %s76, %s90
      %p92 = scmp.eq.s32.totalorder %s19, 0
      %p93 = por %p91, %p92
      %s95 = sadd.s32 %s94, 1
      %p98 = scmp.eq.s32.totalorder %s13, 1
      %p99 = scmp.ne.s32.totalorder %s94, %s96
      %p100 = scmp.eq.s32.totalorder %s13, 0
      %p101 = por %p99, %p100
      %p102 = scmp.ne.s32.totalorder %s94, %s96
      %p103 = scmp.eq.s32.totalorder %s18, 1
      %p104 = por %p102, %p103
      %p105 = scmp.ne.s32.totalorder %s96, %s97
      %p106 = scmp.eq.s32.totalorder %s18, 0
      %p107 = por %p105, %p106
      %p108 = scmp.ne.s32.totalorder %s96, %s97
      %p109 = scmp.eq.s32.totalorder %s19, 1
      %p110 = por %p108, %p109
      %p112 = scmp.ne.s32.totalorder %s97, %s111
      %p113 = scmp.eq.s32.totalorder %s19, 0
      %p114 = por %p112, %p113
      %s116 = sadd.s32 %s115, 1
      %p119 = scmp.eq.s32.totalorder %s13, 1
      %p120 = scmp.ne.s32.totalorder %s115, %s117
      %p121 = scmp.eq.s32.totalorder %s13, 0
      %p122 = por %p120, %p121
      %p123 = scmp.ne.s32.totalorder %s115, %s117
      %p124 = scmp.eq.s32.totalorder %s18, 1
      %p125 = por %p123, %p124
      %p126 = scmp.ne.s32.totalorder %s117, %s118
      %p127 = scmp.eq.s32.totalorder %s18, 0
      %p128 = por %p126, %p127
      %p129 = scmp.ne.s32.totalorder %s117, %s118
      %p130 = scmp.eq.s32.totalorder %s19, 1
      %p131 = por %p129, %p130
      %p133 = scmp.ne.s32.totalorder %s118, %s132
      %p134 = scmp.eq.s32.totalorder %s19, 0
      %p135 = por %p133, %p134
      %s137 = sadd.s32 %s136, 1
      %p140 = scmp.eq.s32.totalorder %s13, 1
      %p141 = scmp.ne.s32.totalorder %s136, %s138
      %p142 = scmp.eq.s32.totalorder %s13, 0
      %p143 = por %p141, %p142
      %p144 = scmp.ne.s32.totalorder %s136, %s138
      %p145 = scmp.eq.s32.totalorder %s18, 1
      %p146 = por %p144, %p145
      %p147 = scmp.ne.s32.totalorder %s138, %s139
      %p148 = scmp.eq.s32.totalorder %s18, 0
      %p149 = por %p147, %p148
      %p150 = scmp.ne.s32.totalorder %s138, %s139
      %p151 = scmp.eq.s32.totalorder %s19, 1
      %p152 = por %p150, %p151
      %p154 = scmp.ne.s32.totalorder %s139, %s153
      %p155 = scmp.eq.s32.totalorder %s19, 0
      %p156 = por %p154, %p155
      %s157 = ssub.s32 %s13, %s20
      %p158 = scmp.eq.s32.totalorder %s157, 0
      %s160 = sadd.s32 %s159, 1
      %s161 = scalar_select %p158, %s159, %s160
      %p164 = pneg %p158
      %p165 = scmp.eq.s32.totalorder %s13, 1
      %p166 = por %p164, %p165
      %p167 = scmp.ne.s32.totalorder %s159, %s162
      %p168 = scmp.eq.s32.totalorder %s13, 0
      %p169 = por %p167, %p168
      %p170 = scmp.ne.s32.totalorder %s159, %s162
      %p171 = scmp.eq.s32.totalorder %s18, 1
      %p172 = por %p170, %p171
      %p173 = scmp.ne.s32.totalorder %s162, %s163
      %p174 = scmp.eq.s32.totalorder %s18, 0
      %p175 = por %p173, %p174
      %p176 = scmp.ne.s32.totalorder %s162, %s163
      %p177 = scmp.eq.s32.totalorder %s19, 1
      %p178 = por %p176, %p177
      %p180 = scmp.ne.s32.totalorder %s163, %s179
      %p181 = scmp.eq.s32.totalorder %s19, 0
      %p182 = por %p180, %p181
      %p183 = scmp.le.s32.totalorder 1, %s13
      %p184 = scmp.lt.s32.totalorder %s13, 3
      %p185 = pnand %p183, %p184
      %p186 = pneg %p185
      // Predicated region
      $region9: #{tpu_custom_call.1} parent=5 // pred_check
        _
      $region10: #{tpu_custom_call.1} parent=5 // pred_check_branch
        %188 = sbr.rel (%p185) target = $region12
      $region11: #{tpu_custom_call.1} parent=5 // pred_region
        %s189 = ssub.s32 %s13, 1
        // Predicated region
        $region13: #{tpu_custom_call.1} parent=11 // pred_check
          %p190 = pneg %p86
        $region14: #{tpu_custom_call.1} parent=11 // pred_check_branch
          %192 = sbr.rel (%p190) target = $region16
        $region15: #{tpu_custom_call.1} parent=11 // pred_region
          %s194 = ssub.s32 16384, 16384
          %195 = vsyncadd [#allocation3], %s194
          %s196 = sshll.u32 [#allocation2], 4
          %s197 = int_to_ptr.vmem [resolvable:$true] %s196
          %202 = dma.hbm_to_vmem [thread:$0]  %s2, 16384, %s197, [#allocation3], 128, 128, 8
        $region16: #{tpu_custom_call.1} parent=11 // pred_fallthru
          _
        // Predicated region
        $region17: #{tpu_custom_call.1} parent=11 // pred_check
          %p203 = pneg %p107
        $region18: #{tpu_custom_call.1} parent=11 // pred_check_branch
          %205 = sbr.rel (%p203) target = $region20
        $region19: #{tpu_custom_call.1} parent=11 // pred_region
          _
        $region20: #{tpu_custom_call.1} parent=11 // pred_fallthru
          _
        // Predicated region
        $region21: #{tpu_custom_call.1} parent=11 // pred_check
          %p206 = pneg %p128
        $region22: #{tpu_custom_call.1} parent=11 // pred_check_branch
          %208 = sbr.rel (%p206) target = $region24
        $region23: #{tpu_custom_call.1} parent=11 // pred_region
          _
        $region24: #{tpu_custom_call.1} parent=11 // pred_fallthru
          _
        // Predicated region
        $region25: #{tpu_custom_call.1} parent=11 // pred_check
          %p209 = pneg %p149
        $region26: #{tpu_custom_call.1} parent=11 // pred_check_branch
          %211 = sbr.rel (%p209) target = $region28
        $region27: #{tpu_custom_call.1} parent=11 // pred_region
          _
        $region28: #{tpu_custom_call.1} parent=11 // pred_fallthru
          _
      $region12: #{tpu_custom_call.1} parent=5 // pred_fallthru
        _
      %p212 = scmp.lt.s32.totalorder %s13, 2
      // Predicated region
      $region29: #{tpu_custom_call.1} parent=5 // pred_check
        %p213 = pneg %p212
      $region30: #{tpu_custom_call.1} parent=5 // pred_check_branch
        %215 = sbr.rel (%p213) target = $region32
      $region31: #{tpu_custom_call.1} parent=5 // pred_region
        // Predicated region
        $region33: #{tpu_custom_call.1} parent=31 // pred_check
          %p216 = pneg %p33
        $region34: #{tpu_custom_call.1} parent=31 // pred_check_branch
          %218 = sbr.rel (%p216) target = $region36
        $region35: #{tpu_custom_call.1} parent=31 // pred_region
          %p219 = scmp.lt.s32.totalorder %s13, 1
          %s220 = scalar_select %p219, %s13, 1
          %s221 = smul.addr %s220, 4
          %s222 = smul.addr %s221, 8
          %s223 = scalar_lea.vmem %s0, %s222
        $region36: #{tpu_custom_call.1} parent=31 // pred_fallthru
          _
        // Predicated region
        $region37: #{tpu_custom_call.1} parent=31 // pred_check
          %p224 = pneg %p59
        $region38: #{tpu_custom_call.1} parent=31 // pred_check_branch
          %226 = sbr.rel (%p224) target = $region40
        $region39: #{tpu_custom_call.1} parent=31 // pred_region
          %p227 = scmp.lt.s32.totalorder %s13, 1
          %s228 = scalar_select %p227, %s13, 1
          %s229 = smul.addr %s228, 4
          %s230 = smul.addr %s229, 8
          %s231 = scalar_lea.vmem %s1, %s230
        $region40: #{tpu_custom_call.1} parent=31 // pred_fallthru
          _
      $region32: #{tpu_custom_call.1} parent=5 // pred_fallthru
        _
      %p232 = scmp.le.s32.totalorder 1, %s13
      %p233 = scmp.lt.s32.totalorder %s13, 3
      %p234 = pnand %p232, %p233
      %p235 = pneg %p234
      // Predicated region
      $region41: #{tpu_custom_call.1} parent=5 // pred_check
        _
      $region42: #{tpu_custom_call.1} parent=5 // pred_check_branch
        %237 = sbr.rel (%p234) target = $region44
      $region43: #{tpu_custom_call.1} parent=5 // pred_region
        %s238 = ssub.s32 %s13, 1
        // Predicated region
        $region45: #{tpu_custom_call.1} parent=43 // pred_check
          %p239 = pneg %p86
        $region46: #{tpu_custom_call.1} parent=43 // pred_check_branch
          %241 = sbr.rel (%p239) target = $region48
        $region47: #{tpu_custom_call.1} parent=43 // pred_region
          %242 = dma.done [#allocation3], 16384
        $region48: #{tpu_custom_call.1} parent=43 // pred_fallthru
          _
        %p243 = scmp.lt.s32.totalorder %s18, 1
        %s244 = scalar_select %p243, %s18, 1
        %s245 = smul.addr %s244, 4
        %s246 = smul.addr %s245, 8
        %s247 = scalar_lea.vmem %s0, %s246
        %p248 = pneg %p39
        %p249 = pneg %p36
        %p250 = scmp.lt.s32.totalorder %s18, 1
        %s251 = scalar_select %p250, %s18, 1
        %s252 = smul.addr %s251, 4
        %s253 = smul.addr %s252, 8
        %s254 = scalar_lea.vmem %s1, %s253
        %p255 = pneg %p65
        %p256 = pneg %p62
        %p257 = pneg %p86
        %p258 = pneg %p83
        %p259 = pneg %p107
        %p260 = pneg %p104
        %p261 = pneg %p128
        %p262 = pneg %p125
        %p263 = pneg %p149
        %p264 = pneg %p146
        %p265 = pneg %p175
        %p266 = pneg %p172
        %p267 = scmp.lt.s32.totalorder %s18, 1
        %s268 = scalar_select %p267, %s18, 1
        %s269 = smul.addr %s268, 8
        %s270 = smul.addr %s269, 8
        %s271 = scalar_lea.vmem %s6, %s270
        %p272 = scmp.lt.s32.totalorder %s18, 1
        %s273 = scalar_select %p272, %s18, 1
        %s274 = smul.addr %s273, 4
        %s275 = smul.addr %s274, 8
        %s276 = scalar_lea.vmem %s0, %s275
        %p277 = scmp.lt.s32.totalorder %s18, 1
        %s278 = scalar_select %p277, %s18, 1
        %s279 = smul.addr %s278, 4
        %s280 = smul.addr %s279, 8
        %s281 = scalar_lea.vmem %s1, %s280
        %p282 = scmp.lt.s32.totalorder %s18, 1
        %s283 = scalar_select %p282, %s18, 1
        %s284 = smul.addr %s283, 8
        %s285 = smul.addr %s284, 8
        %s286 = scalar_lea.vmem %s6, %s285
        %v287 = vld [vmem:[%s276] sm:$0xff]
        %v288 = vld [vmem:[%s276 + $0x8] sm:$0xff]
        %v289 = vld [vmem:[%s276 + $0x10] sm:$0xff]
        %v290 = vld [vmem:[%s276 + $0x18] sm:$0x1f]
        %v291 = vld [vmem:[%s281] sm:$0xff]
        %v292 = vld [vmem:[%s281 + $0x8] sm:$0xff]
        %v293 = vld [vmem:[%s281 + $0x10] sm:$0xff]
        %v294 = vld [vmem:[%s281 + $0x18] sm:$0x1f]
        %v295 = vld [vmem:[#allocation2] sm:$0xff]
        %v296 = vld [vmem:[#allocation2 + $0x8] sm:$0xff]
        %v297 = vld [vmem:[#allocation2 + $0x10] sm:$0xff]
        %v298 = vld [vmem:[#allocation2 + $0x18] sm:$0xff]
        %v299 = vld [vmem:[#allocation2 + $0x20] sm:$0xff]
        %v300 = vld [vmem:[#allocation2 + $0x28] sm:$0xff]
        %v301 = vld [vmem:[#allocation2 + $0x30] sm:$0xff]
        %v302 = vld [vmem:[#allocation2 + $0x38] sm:$0xff]
        %v303 = vld [vmem:[#allocation2 + $0x40] sm:$0xff]
        %v304 = vld [vmem:[#allocation2 + $0x48] sm:$0xff]
        %v305 = vld [vmem:[#allocation2 + $0x50] sm:$0xff]
        %v306 = vld [vmem:[#allocation2 + $0x58] sm:$0xff]
        %v307 = vld [vmem:[#allocation2 + $0x60] sm:$0xff]
        %v308 = vld [vmem:[#allocation2 + $0x68] sm:$0xff]
        %v309 = vld [vmem:[#allocation2 + $0x70] sm:$0xff]
        %v310 = vld [vmem:[#allocation2 + $0x78] sm:$0xff]
        %v311 = vld [vmem:[%s3] sm:$0x1]
        %v312 = vlaneseq
        %v313 = vshrl.u32 %v312, 7
        %v314 = vsub.s32 0, %v313
        %v315 = vrot.slane %v311, %v314
        %316 = vmatprep.subr.mxu0 0.0
        %317 = vmatpush1.msra.mxu0 %v310
        %318 = vmatprep.subr.mxu0 0.0
        %319 = vmatpush1.msra.mxu0 %v309
        %320 = vmatprep.subr.mxu0 0.0
        %321 = vmatpush1.msra.mxu0 %v308
        %322 = vmatprep.subr.mxu0 0.0
        %323 = vmatpush1.msra.mxu0 %v307
        %324 = vmatprep.subr.mxu0 0.0
        %325 = vmatpush1.msra.mxu0 %v306
        %326 = vmatprep.subr.mxu0 0.0
        %327 = vmatpush1.msra.mxu0 %v305
        %328 = vmatprep.subr.mxu0 0.0
        %329 = vmatpush1.msra.mxu0 %v304
        %330 = vmatprep.subr.mxu0 0.0
        %331 = vmatpush1.msra.mxu0 %v303
        %332 = vmatprep.subr.mxu0 0.0
        %333 = vmatpush1.msra.mxu0 %v302
        %334 = vmatprep.subr.mxu0 0.0
        %335 = vmatpush1.msra.mxu0 %v301
        %336 = vmatprep.subr.mxu0 0.0
        %337 = vmatpush1.msra.mxu0 %v300
        %338 = vmatprep.subr.mxu0 0.0
        %339 = vmatpush1.msra.mxu0 %v299
        %340 = vmatprep.subr.mxu0 0.0
        %341 = vmatpush1.msra.mxu0 %v298
        %342 = vmatprep.subr.mxu0 0.0
        %343 = vmatpush1.msra.mxu0 %v297
        %344 = vmatprep.subr.mxu0 0.0
        %345 = vmatpush1.msra.mxu0 %v296
        %346 = vmatprep.subr.mxu0 0.0
        %347 = vmatpush1.msra.mxu0 %v295
        %348 = vmatprep.subr.mxu0 0.0
        %349 = vmatpush2.msra.mxu0 0.0
        %350 = vmatprep.subr.mxu0 0.0
        %351 = vmatpush2.msra.mxu0 0.0
        %352 = vmatprep.subr.mxu0 0.0
        %353 = vmatpush2.msra.mxu0 0.0
        %354 = vmatprep.subr.mxu0 0.0
        %355 = vmatpush2.msra.mxu0 0.0
        %356 = vmatprep.subr.mxu0 0.0
        %357 = vmatpush2.msra.mxu0 0.0
        %358 = vmatprep.subr.mxu0 0.0
        %359 = vmatpush2.msra.mxu0 0.0
        %360 = vmatprep.subr.mxu0 0.0
        %361 = vmatpush2.msra.mxu0 0.0
        %362 = vmatprep.subr.mxu0 0.0
        %363 = vmatpush2.msra.mxu0 0.0
        %364 = vmatprep.subr.mxu0 0.0
        %365 = vmatpush2.msra.mxu0 0.0
        %366 = vmatprep.subr.mxu0 0.0
        %367 = vmatpush2.msra.mxu0 0.0
        %368 = vmatprep.subr.mxu0 0.0
        %369 = vmatpush2.msra.mxu0 0.0
        %370 = vmatprep.subr.mxu0 0.0
        %371 = vmatpush2.msra.mxu0 0.0
        %372 = vmatprep.subr.mxu0 0.0
        %373 = vmatpush2.msra.mxu0 0.0
        %374 = vmatprep.subr.mxu0 0.0
        %375 = vmatpush2.msra.mxu0 0.0
        %376 = vmatprep.subr.mxu0 0.0
        %377 = vmatpush2.msra.mxu0 0.0
        %378 = vmatprep.subr.mxu0 0.0
        %379 = vmatpush2.msra.mxu0 0.0
        %380 = vmatprep.mubr.f32.mxu0 0.0
        %381 = vmatmul.mubr.f32.gmra.mxu0 %v287
        %v382 = vpop.f32.mrf.mxu0
        %v383 = vadd.f32 %v315, %v382
        %v384 = vpop.f32.mrf.mxu0
        %385 = vmatprep.mubr.f32.mxu0 0.0
        %386 = vmatmul.mubr.f32.gmra.mxu0 %v288
        %v387 = vpop.f32.mrf.mxu0
        %v388 = vadd.f32 %v315, %v387
        %v389 = vpop.f32.mrf.mxu0
        %390 = vmatprep.mubr.f32.mxu0 0.0
        %391 = vmatmul.mubr.f32.gmra.mxu0 %v289
        %v392 = vpop.f32.mrf.mxu0
        %v393 = vadd.f32 %v315, %v392
        %v394 = vpop.f32.mrf.mxu0
        %395 = vmatprep.mubr.f32.mxu0 0.0
        %396 = vmatmul.mubr.f32.gmra.mxu0 %v290
        %v397 = vpop.f32.mrf.mxu0
        %v398 = vadd.f32 %v315, %v397
        %v399 = vpop.f32.mrf.mxu0
        %400 = vdwg.mxu0
        %s401 = scalar_lea.vmem [#allocation2], 128
        %v402 = vld [vmem:[%s401] sm:$0xff]
        %v403 = vld [vmem:[%s401 + $0x8] sm:$0xff]
        %v404 = vld [vmem:[%s401 + $0x10] sm:$0xff]
        %v405 = vld [vmem:[%s401 + $0x18] sm:$0xff]
        %v406 = vld [vmem:[%s401 + $0x20] sm:$0xff]
        %v407 = vld [vmem:[%s401 + $0x28] sm:$0xff]
        %v408 = vld [vmem:[%s401 + $0x30] sm:$0xff]
        %v409 = vld [vmem:[%s401 + $0x38] sm:$0xff]
        %v410 = vld [vmem:[%s401 + $0x40] sm:$0xff]
        %v411 = vld [vmem:[%s401 + $0x48] sm:$0xff]
        %v412 = vld [vmem:[%s401 + $0x50] sm:$0xff]
        %v413 = vld [vmem:[%s401 + $0x58] sm:$0xff]
        %v414 = vld [vmem:[%s401 + $0x60] sm:$0xff]
        %v415 = vld [vmem:[%s401 + $0x68] sm:$0xff]
        %v416 = vld [vmem:[%s401 + $0x70] sm:$0xff]
        %v417 = vld [vmem:[%s401 + $0x78] sm:$0xff]
        %v418 = vld [vmem:[%s3 + $0x1] sm:$0x1]
        %v419 = vlaneseq
        %v420 = vshrl.u32 %v419, 7
        %v421 = vsub.s32 0, %v420
        %v422 = vrot.slane %v418, %v421
        %423 = vmatprep.subr.mxu0 0.0
        %424 = vmatpush1.msra.mxu0 %v417
        %425 = vmatprep.subr.mxu0 0.0
        %426 = vmatpush1.msra.mxu0 %v416
        %427 = vmatprep.subr.mxu0 0.0
        %428 = vmatpush1.msra.mxu0 %v415
        %429 = vmatprep.subr.mxu0 0.0
        %430 = vmatpush1.msra.mxu0 %v414
        %431 = vmatprep.subr.mxu0 0.0
        %432 = vmatpush1.msra.mxu0 %v413
        %433 = vmatprep.subr.mxu0 0.0
        %434 = vmatpush1.msra.mxu0 %v412
        %435 = vmatprep.subr.mxu0 0.0
        %436 = vmatpush1.msra.mxu0 %v411
        %437 = vmatprep.subr.mxu0 0.0
        %438 = vmatpush1.msra.mxu0 %v410
        %439 = vmatprep.subr.mxu0 0.0
        %440 = vmatpush1.msra.mxu0 %v409
        %441 = vmatprep.subr.mxu0 0.0
        %442 = vmatpush1.msra.mxu0 %v408
        %443 = vmatprep.subr.mxu0 0.0
        %444 = vmatpush1.msra.mxu0 %v407
        %445 = vmatprep.subr.mxu0 0.0
        %446 = vmatpush1.msra.mxu0 %v406
        %447 = vmatprep.subr.mxu0 0.0
        %448 = vmatpush1.msra.mxu0 %v405
        %449 = vmatprep.subr.mxu0 0.0
        %450 = vmatpush1.msra.mxu0 %v404
        %451 = vmatprep.subr.mxu0 0.0
        %452 = vmatpush1.msra.mxu0 %v403
        %453 = vmatprep.subr.mxu0 0.0
        %454 = vmatpush1.msra.mxu0 %v402
        %455 = vmatprep.subr.mxu0 0.0
        %456 = vmatpush2.msra.mxu0 0.0
        %457 = vmatprep.subr.mxu0 0.0
        %458 = vmatpush2.msra.mxu0 0.0
        %459 = vmatprep.subr.mxu0 0.0
        %460 = vmatpush2.msra.mxu0 0.0
        %461 = vmatprep.subr.mxu0 0.0
        %462 = vmatpush2.msra.mxu0 0.0
        %463 = vmatprep.subr.mxu0 0.0
        %464 = vmatpush2.msra.mxu0 0.0
        %465 = vmatprep.subr.mxu0 0.0
        %466 = vmatpush2.msra.mxu0 0.0
        %467 = vmatprep.subr.mxu0 0.0
        %468 = vmatpush2.msra.mxu0 0.0
        %469 = vmatprep.subr.mxu0 0.0
        %470 = vmatpush2.msra.mxu0 0.0
        %471 = vmatprep.subr.mxu0 0.0
        %472 = vmatpush2.msra.mxu0 0.0
        %473 = vmatprep.subr.mxu0 0.0
        %474 = vmatpush2.msra.mxu0 0.0
        %475 = vmatprep.subr.mxu0 0.0
        %476 = vmatpush2.msra.mxu0 0.0
        %477 = vmatprep.subr.mxu0 0.0
        %478 = vmatpush2.msra.mxu0 0.0
        %479 = vmatprep.subr.mxu0 0.0
        %480 = vmatpush2.msra.mxu0 0.0
        %481 = vmatprep.subr.mxu0 0.0
        %482 = vmatpush2.msra.mxu0 0.0
        %483 = vmatprep.subr.mxu0 0.0
        %484 = vmatpush2.msra.mxu0 0.0
        %485 = vmatprep.subr.mxu0 0.0
        %486 = vmatpush2.msra.mxu0 0.0
        %487 = vmatprep.mubr.f32.mxu0 0.0
        %488 = vmatmul.mubr.f32.gmra.mxu0 %v287
        %v489 = vpop.f32.mrf.mxu0
        %v490 = vadd.f32 %v422, %v489
        %v491 = vpop.f32.mrf.mxu0
        %492 = vmatprep.mubr.f32.mxu0 0.0
        %493 = vmatmul.mubr.f32.gmra.mxu0 %v288
        %v494 = vpop.f32.mrf.mxu0
        %v495 = vadd.f32 %v422, %v494
        %v496 = vpop.f32.mrf.mxu0
        %497 = vmatprep.mubr.f32.mxu0 0.0
        %498 = vmatmul.mubr.f32.gmra.mxu0 %v289
        %v499 = vpop.f32.mrf.mxu0
        %v500 = vadd.f32 %v422, %v499
        %v501 = vpop.f32.mrf.mxu0
        %502 = vmatprep.mubr.f32.mxu0 0.0
        %503 = vmatmul.mubr.f32.gmra.mxu0 %v290
        %v504 = vpop.f32.mrf.mxu0
        %v505 = vadd.f32 %v422, %v504
        %v506 = vpop.f32.mrf.mxu0
        %507 = vdwg.mxu0
        %s508 = scalar_lea.vmem [#allocation2], 256
        %v509 = vld [vmem:[%s508] sm:$0xff]
        %v510 = vld [vmem:[%s508 + $0x8] sm:$0xff]
        %v511 = vld [vmem:[%s508 + $0x10] sm:$0xff]
        %v512 = vld [vmem:[%s508 + $0x18] sm:$0xff]
        %v513 = vld [vmem:[%s508 + $0x20] sm:$0xff]
        %v514 = vld [vmem:[%s508 + $0x28] sm:$0xff]
        %v515 = vld [vmem:[%s508 + $0x30] sm:$0xff]
        %v516 = vld [vmem:[%s508 + $0x38] sm:$0xff]
        %v517 = vld [vmem:[%s508 + $0x40] sm:$0xff]
        %v518 = vld [vmem:[%s508 + $0x48] sm:$0xff]
        %v519 = vld [vmem:[%s508 + $0x50] sm:$0xff]
        %v520 = vld [vmem:[%s508 + $0x58] sm:$0xff]
        %v521 = vld [vmem:[%s508 + $0x60] sm:$0xff]
        %v522 = vld [vmem:[%s508 + $0x68] sm:$0xff]
        %v523 = vld [vmem:[%s508 + $0x70] sm:$0xff]
        %v524 = vld [vmem:[%s508 + $0x78] sm:$0xff]
        %v525 = vld [vmem:[%s3 + $0x2] sm:$0x1]
        %v526 = vlaneseq
        %v527 = vshrl.u32 %v526, 7
        %v528 = vsub.s32 0, %v527
        %v529 = vrot.slane %v525, %v528
        %530 = vmatprep.subr.mxu0 0.0
        %531 = vmatpush1.msra.mxu0 %v524
        %532 = vmatprep.subr.mxu0 0.0
        %533 = vmatpush1.msra.mxu0 %v523
        %534 = vmatprep.subr.mxu0 0.0
        %535 = vmatpush1.msra.mxu0 %v522
        %536 = vmatprep.subr.mxu0 0.0
        %537 = vmatpush1.msra.mxu0 %v521
        %538 = vmatprep.subr.mxu0 0.0
        %539 = vmatpush1.msra.mxu0 %v520
        %540 = vmatprep.subr.mxu0 0.0
        %541 = vmatpush1.msra.mxu0 %v519
        %542 = vmatprep.subr.mxu0 0.0
        %543 = vmatpush1.msra.mxu0 %v518
        %544 = vmatprep.subr.mxu0 0.0
        %545 = vmatpush1.msra.mxu0 %v517
        %546 = vmatprep.subr.mxu0 0.0
        %547 = vmatpush1.msra.mxu0 %v516
        %548 = vmatprep.subr.mxu0 0.0
        %549 = vmatpush1.msra.mxu0 %v515
        %550 = vmatprep.subr.mxu0 0.0
        %551 = vmatpush1.msra.mxu0 %v514
        %552 = vmatprep.subr.mxu0 0.0
        %553 = vmatpush1.msra.mxu0 %v513
        %554 = vmatprep.subr.mxu0 0.0
        %555 = vmatpush1.msra.mxu0 %v512
        %556 = vmatprep.subr.mxu0 0.0
        %557 = vmatpush1.msra.mxu0 %v511
        %558 = vmatprep.subr.mxu0 0.0
        %559 = vmatpush1.msra.mxu0 %v510
        %560 = vmatprep.subr.mxu0 0.0
        %561 = vmatpush1.msra.mxu0 %v509
        %562 = vmatprep.subr.mxu0 0.0
        %563 = vmatpush2.msra.mxu0 0.0
        %564 = vmatprep.subr.mxu0 0.0
        %565 = vmatpush2.msra.mxu0 0.0
        %566 = vmatprep.subr.mxu0 0.0
        %567 = vmatpush2.msra.mxu0 0.0
        %568 = vmatprep.subr.mxu0 0.0
        %569 = vmatpush2.msra.mxu0 0.0
        %570 = vmatprep.subr.mxu0 0.0
        %571 = vmatpush2.msra.mxu0 0.0
        %572 = vmatprep.subr.mxu0 0.0
        %573 = vmatpush2.msra.mxu0 0.0
        %574 = vmatprep.subr.mxu0 0.0
        %575 = vmatpush2.msra.mxu0 0.0
        %576 = vmatprep.subr.mxu0 0.0
        %577 = vmatpush2.msra.mxu0 0.0
        %578 = vmatprep.subr.mxu0 0.0
        %579 = vmatpush2.msra.mxu0 0.0
        %580 = vmatprep.subr.mxu0 0.0
        %581 = vmatpush2.msra.mxu0 0.0
        %582 = vmatprep.subr.mxu0 0.0
        %583 = vmatpush2.msra.mxu0 0.0
        %584 = vmatprep.subr.mxu0 0.0
        %585 = vmatpush2.msra.mxu0 0.0
        %586 = vmatprep.subr.mxu0 0.0
        %587 = vmatpush2.msra.mxu0 0.0
        %588 = vmatprep.subr.mxu0 0.0
        %589 = vmatpush2.msra.mxu0 0.0
        %590 = vmatprep.subr.mxu0 0.0
        %591 = vmatpush2.msra.mxu0 0.0
        %592 = vmatprep.subr.mxu0 0.0
        %593 = vmatpush2.msra.mxu0 0.0
        %594 = vmatprep.mubr.f32.mxu0 0.0
        %595 = vmatmul.mubr.f32.gmra.mxu0 %v287
        %v596 = vpop.f32.mrf.mxu0
        %v597 = vadd.f32 %v529, %v596
        %v598 = vpop.f32.mrf.mxu0
        %599 = vmatprep.mubr.f32.mxu0 0.0
        %600 = vmatmul.mubr.f32.gmra.mxu0 %v288
        %v601 = vpop.f32.mrf.mxu0
        %v602 = vadd.f32 %v529, %v601
        %v603 = vpop.f32.mrf.mxu0
        %604 = vmatprep.mubr.f32.mxu0 0.0
        %605 = vmatmul.mubr.f32.gmra.mxu0 %v289
        %v606 = vpop.f32.mrf.mxu0
        %v607 = vadd.f32 %v529, %v606
        %v608 = vpop.f32.mrf.mxu0
        %609 = vmatprep.mubr.f32.mxu0 0.0
        %610 = vmatmul.mubr.f32.gmra.mxu0 %v290
        %v611 = vpop.f32.mrf.mxu0
        %v612 = vadd.f32 %v529, %v611
        %v613 = vpop.f32.mrf.mxu0
        %614 = vdwg.mxu0
        %s615 = scalar_lea.vmem [#allocation2], 512
        %v616 = vld [vmem:[%s615] sm:$0xff]
        %v617 = vld [vmem:[%s615 + $0x8] sm:$0xff]
        %v618 = vld [vmem:[%s615 + $0x10] sm:$0xff]
        %v619 = vld [vmem:[%s615 + $0x18] sm:$0xff]
        %v620 = vld [vmem:[%s615 + $0x20] sm:$0xff]
        %v621 = vld [vmem:[%s615 + $0x28] sm:$0xff]
        %v622 = vld [vmem:[%s615 + $0x30] sm:$0xff]
        %v623 = vld [vmem:[%s615 + $0x38] sm:$0xff]
        %v624 = vld [vmem:[%s615 + $0x40] sm:$0xff]
        %v625 = vld [vmem:[%s615 + $0x48] sm:$0xff]
        %v626 = vld [vmem:[%s615 + $0x50] sm:$0xff]
        %v627 = vld [vmem:[%s615 + $0x58] sm:$0xff]
        %v628 = vld [vmem:[%s615 + $0x60] sm:$0xff]
        %v629 = vld [vmem:[%s615 + $0x68] sm:$0xff]
        %v630 = vld [vmem:[%s615 + $0x70] sm:$0xff]
        %v631 = vld [vmem:[%s615 + $0x78] sm:$0xff]
        %v632 = vld [vmem:[%s3 + $0x4] sm:$0x1]
        %v633 = vlaneseq
        %v634 = vshrl.u32 %v633, 7
        %v635 = vsub.s32 0, %v634
        %v636 = vrot.slane %v632, %v635
        %637 = vmatprep.subr.mxu0 0.0
        %638 = vmatpush1.msra.mxu0 %v631
        %639 = vmatprep.subr.mxu0 0.0
        %640 = vmatpush1.msra.mxu0 %v630
        %641 = vmatprep.subr.mxu0 0.0
        %642 = vmatpush1.msra.mxu0 %v629
        %643 = vmatprep.subr.mxu0 0.0
        %644 = vmatpush1.msra.mxu0 %v628
        %645 = vmatprep.subr.mxu0 0.0
        %646 = vmatpush1.msra.mxu0 %v627
        %647 = vmatprep.subr.mxu0 0.0
        %648 = vmatpush1.msra.mxu0 %v626
        %649 = vmatprep.subr.mxu0 0.0
        %650 = vmatpush1.msra.mxu0 %v625
        %651 = vmatprep.subr.mxu0 0.0
        %652 = vmatpush1.msra.mxu0 %v624
        %653 = vmatprep.subr.mxu0 0.0
        %654 = vmatpush1.msra.mxu0 %v623
        %655 = vmatprep.subr.mxu0 0.0
        %656 = vmatpush1.msra.mxu0 %v622
        %657 = vmatprep.subr.mxu0 0.0
        %658 = vmatpush1.msra.mxu0 %v621
        %659 = vmatprep.subr.mxu0 0.0
        %660 = vmatpush1.msra.mxu0 %v620
        %661 = vmatprep.subr.mxu0 0.0
        %662 = vmatpush1.msra.mxu0 %v619
        %663 = vmatprep.subr.mxu0 0.0
        %664 = vmatpush1.msra.mxu0 %v618
        %665 = vmatprep.subr.mxu0 0.0
        %666 = vmatpush1.msra.mxu0 %v617
        %667 = vmatprep.subr.mxu0 0.0
        %668 = vmatpush1.msra.mxu0 %v616
        %669 = vmatprep.subr.mxu0 0.0
        %670 = vmatpush2.msra.mxu0 0.0
        %671 = vmatprep.subr.mxu0 0.0
        %672 = vmatpush2.msra.mxu0 0.0
        %673 = vmatprep.subr.mxu0 0.0
        %674 = vmatpush2.msra.mxu0 0.0
        %675 = vmatprep.subr.mxu0 0.0
        %676 = vmatpush2.msra.mxu0 0.0
        %677 = vmatprep.subr.mxu0 0.0
        %678 = vmatpush2.msra.mxu0 0.0
        %679 = vmatprep.subr.mxu0 0.0
        %680 = vmatpush2.msra.mxu0 0.0
        %681 = vmatprep.subr.mxu0 0.0
        %682 = vmatpush2.msra.mxu0 0.0
        %683 = vmatprep.subr.mxu0 0.0
        %684 = vmatpush2.msra.mxu0 0.0
        %685 = vmatprep.subr.mxu0 0.0
        %686 = vmatpush2.msra.mxu0 0.0
        %687 = vmatprep.subr.mxu0 0.0
        %688 = vmatpush2.msra.mxu0 0.0
        %689 = vmatprep.subr.mxu0 0.0
        %690 = vmatpush2.msra.mxu0 0.0
        %691 = vmatprep.subr.mxu0 0.0
        %692 = vmatpush2.msra.mxu0 0.0
        %693 = vmatprep.subr.mxu0 0.0
        %694 = vmatpush2.msra.mxu0 0.0
        %695 = vmatprep.subr.mxu0 0.0
        %696 = vmatpush2.msra.mxu0 0.0
        %697 = vmatprep.subr.mxu0 0.0
        %698 = vmatpush2.msra.mxu0 0.0
        %699 = vmatprep.subr.mxu0 0.0
        %700 = vmatpush2.msra.mxu0 0.0
        %701 = vmatprep.mubr.f32.mxu0 0.0
        %702 = vmatmul.mubr.f32.gmra.mxu0 %v291
        %v703 = vpop.f32.mrf.mxu0
        %v704 = vadd.f32 %v636, %v703
        %v705 = vpop.f32.mrf.mxu0
        %706 = vmatprep.mubr.f32.mxu0 0.0
        %707 = vmatmul.mubr.f32.gmra.mxu0 %v292
        %v708 = vpop.f32.mrf.mxu0
        %v709 = vadd.f32 %v636, %v708
        %v710 = vpop.f32.mrf.mxu0
        %711 = vmatprep.mubr.f32.mxu0 0.0
        %712 = vmatmul.mubr.f32.gmra.mxu0 %v293
        %v713 = vpop.f32.mrf.mxu0
        %v714 = vadd.f32 %v636, %v713
        %v715 = vpop.f32.mrf.mxu0
        %716 = vmatprep.mubr.f32.mxu0 0.0
        %717 = vmatmul.mubr.f32.gmra.mxu0 %v294
        %v718 = vpop.f32.mrf.mxu0
        %v719 = vadd.f32 %v636, %v718
        %v720 = vpop.f32.mrf.mxu0
        %721 = vdwg.mxu0
        %s722 = scalar_lea.vmem [#allocation2], 640
        %v723 = vld [vmem:[%s722] sm:$0xff]
        %v724 = vld [vmem:[%s722 + $0x8] sm:$0xff]
        %v725 = vld [vmem:[%s722 + $0x10] sm:$0xff]
        %v726 = vld [vmem:[%s722 + $0x18] sm:$0xff]
        %v727 = vld [vmem:[%s722 + $0x20] sm:$0xff]
        %v728 = vld [vmem:[%s722 + $0x28] sm:$0xff]
        %v729 = vld [vmem:[%s722 + $0x30] sm:$0xff]
        %v730 = vld [vmem:[%s722 + $0x38] sm:$0xff]
        %v731 = vld [vmem:[%s722 + $0x40] sm:$0xff]
        %v732 = vld [vmem:[%s722 + $0x48] sm:$0xff]
        %v733 = vld [vmem:[%s722 + $0x50] sm:$0xff]
        %v734 = vld [vmem:[%s722 + $0x58] sm:$0xff]
        %v735 = vld [vmem:[%s722 + $0x60] sm:$0xff]
        %v736 = vld [vmem:[%s722 + $0x68] sm:$0xff]
        %v737 = vld [vmem:[%s722 + $0x70] sm:$0xff]
        %v738 = vld [vmem:[%s722 + $0x78] sm:$0xff]
        %v739 = vld [vmem:[%s3 + $0x5] sm:$0x1]
        %v740 = vlaneseq
        %v741 = vshrl.u32 %v740, 7
        %v742 = vsub.s32 0, %v741
        %v743 = vrot.slane %v739, %v742
        %744 = vmatprep.subr.mxu0 0.0
        %745 = vmatpush1.msra.mxu0 %v738
        %746 = vmatprep.subr.mxu0 0.0
        %747 = vmatpush1.msra.mxu0 %v737
        %748 = vmatprep.subr.mxu0 0.0
        %749 = vmatpush1.msra.mxu0 %v736
        %750 = vmatprep.subr.mxu0 0.0
        %751 = vmatpush1.msra.mxu0 %v735
        %752 = vmatprep.subr.mxu0 0.0
        %753 = vmatpush1.msra.mxu0 %v734
        %754 = vmatprep.subr.mxu0 0.0
        %755 = vmatpush1.msra.mxu0 %v733
        %756 = vmatprep.subr.mxu0 0.0
        %757 = vmatpush1.msra.mxu0 %v732
        %758 = vmatprep.subr.mxu0 0.0
        %759 = vmatpush1.msra.mxu0 %v731
        %760 = vmatprep.subr.mxu0 0.0
        %761 = vmatpush1.msra.mxu0 %v730
        %762 = vmatprep.subr.mxu0 0.0
        %763 = vmatpush1.msra.mxu0 %v729
        %764 = vmatprep.subr.mxu0 0.0
        %765 = vmatpush1.msra.mxu0 %v728
        %766 = vmatprep.subr.mxu0 0.0
        %767 = vmatpush1.msra.mxu0 %v727
        %768 = vmatprep.subr.mxu0 0.0
        %769 = vmatpush1.msra.mxu0 %v726
        %770 = vmatprep.subr.mxu0 0.0
        %771 = vmatpush1.msra.mxu0 %v725
        %772 = vmatprep.subr.mxu0 0.0
        %773 = vmatpush1.msra.mxu0 %v724
        %774 = vmatprep.subr.mxu0 0.0
        %775 = vmatpush1.msra.mxu0 %v723
        %776 = vmatprep.subr.mxu0 0.0
        %777 = vmatpush2.msra.mxu0 0.0
        %778 = vmatprep.subr.mxu0 0.0
        %779 = vmatpush2.msra.mxu0 0.0
        %780 = vmatprep.subr.mxu0 0.0
        %781 = vmatpush2.msra.mxu0 0.0
        %782 = vmatprep.subr.mxu0 0.0
        %783 = vmatpush2.msra.mxu0 0.0
        %784 = vmatprep.subr.mxu0 0.0
        %785 = vmatpush2.msra.mxu0 0.0
        %786 = vmatprep.subr.mxu0 0.0
        %787 = vmatpush2.msra.mxu0 0.0
        %788 = vmatprep.subr.mxu0 0.0
        %789 = vmatpush2.msra.mxu0 0.0
        %790 = vmatprep.subr.mxu0 0.0
        %791 = vmatpush2.msra.mxu0 0.0
        %792 = vmatprep.subr.mxu0 0.0
        %793 = vmatpush2.msra.mxu0 0.0
        %794 = vmatprep.subr.mxu0 0.0
        %795 = vmatpush2.msra.mxu0 0.0
        %796 = vmatprep.subr.mxu0 0.0
        %797 = vmatpush2.msra.mxu0 0.0
        %798 = vmatprep.subr.mxu0 0.0
        %799 = vmatpush2.msra.mxu0 0.0
        %800 = vmatprep.subr.mxu0 0.0
        %801 = vmatpush2.msra.mxu0 0.0
        %802 = vmatprep.subr.mxu0 0.0
        %803 = vmatpush2.msra.mxu0 0.0
        %804 = vmatprep.subr.mxu0 0.0
        %805 = vmatpush2.msra.mxu0 0.0
        %806 = vmatprep.subr.mxu0 0.0
        %807 = vmatpush2.msra.mxu0 0.0
        %808 = vmatprep.mubr.f32.mxu0 0.0
        %809 = vmatmul.mubr.f32.gmra.mxu0 %v291
        %v810 = vpop.f32.mrf.mxu0
        %v811 = vadd.f32 %v743, %v810
        %v812 = vpop.f32.mrf.mxu0
        %813 = vmatprep.mubr.f32.mxu0 0.0
        %814 = vmatmul.mubr.f32.gmra.mxu0 %v292
        %v815 = vpop.f32.mrf.mxu0
        %v816 = vadd.f32 %v743, %v815
        %v817 = vpop.f32.mrf.mxu0
        %818 = vmatprep.mubr.f32.mxu0 0.0
        %819 = vmatmul.mubr.f32.gmra.mxu0 %v293
        %v820 = vpop.f32.mrf.mxu0
        %v821 = vadd.f32 %v743, %v820
        %v822 = vpop.f32.mrf.mxu0
        %823 = vmatprep.mubr.f32.mxu0 0.0
        %824 = vmatmul.mubr.f32.gmra.mxu0 %v294
        %v825 = vpop.f32.mrf.mxu0
        %v826 = vadd.f32 %v743, %v825
        %v827 = vpop.f32.mrf.mxu0
        %828 = vdwg.mxu0
        %s829 = scalar_lea.vmem [#allocation2], 768
        %v830 = vld [vmem:[%s829] sm:$0xff]
        %v831 = vld [vmem:[%s829 + $0x8] sm:$0xff]
        %v832 = vld [vmem:[%s829 + $0x10] sm:$0xff]
        %v833 = vld [vmem:[%s829 + $0x18] sm:$0xff]
        %v834 = vld [vmem:[%s829 + $0x20] sm:$0xff]
        %v835 = vld [vmem:[%s829 + $0x28] sm:$0xff]
        %v836 = vld [vmem:[%s829 + $0x30] sm:$0xff]
        %v837 = vld [vmem:[%s829 + $0x38] sm:$0xff]
        %v838 = vld [vmem:[%s829 + $0x40] sm:$0xff]
        %v839 = vld [vmem:[%s829 + $0x48] sm:$0xff]
        %v840 = vld [vmem:[%s829 + $0x50] sm:$0xff]
        %v841 = vld [vmem:[%s829 + $0x58] sm:$0xff]
        %v842 = vld [vmem:[%s829 + $0x60] sm:$0xff]
        %v843 = vld [vmem:[%s829 + $0x68] sm:$0xff]
        %v844 = vld [vmem:[%s829 + $0x70] sm:$0xff]
        %v845 = vld [vmem:[%s829 + $0x78] sm:$0xff]
        %v846 = vld [vmem:[%s3 + $0x6] sm:$0x1]
        %v847 = vlaneseq
        %v848 = vshrl.u32 %v847, 7
        %v849 = vsub.s32 0, %v848
        %v850 = vrot.slane %v846, %v849
        %851 = vmatprep.subr.mxu0 0.0
        %852 = vmatpush1.msra.mxu0 %v845
        %853 = vmatprep.subr.mxu0 0.0
        %854 = vmatpush1.msra.mxu0 %v844
        %855 = vmatprep.subr.mxu0 0.0
        %856 = vmatpush1.msra.mxu0 %v843
        %857 = vmatprep.subr.mxu0 0.0
        %858 = vmatpush1.msra.mxu0 %v842
        %859 = vmatprep.subr.mxu0 0.0
        %860 = vmatpush1.msra.mxu0 %v841
        %861 = vmatprep.subr.mxu0 0.0
        %862 = vmatpush1.msra.mxu0 %v840
        %863 = vmatprep.subr.mxu0 0.0
        %864 = vmatpush1.msra.mxu0 %v839
        %865 = vmatprep.subr.mxu0 0.0
        %866 = vmatpush1.msra.mxu0 %v838
        %867 = vmatprep.subr.mxu0 0.0
        %868 = vmatpush1.msra.mxu0 %v837
        %869 = vmatprep.subr.mxu0 0.0
        %870 = vmatpush1.msra.mxu0 %v836
        %871 = vmatprep.subr.mxu0 0.0
        %872 = vmatpush1.msra.mxu0 %v835
        %873 = vmatprep.subr.mxu0 0.0
        %874 = vmatpush1.msra.mxu0 %v834
        %875 = vmatprep.subr.mxu0 0.0
        %876 = vmatpush1.msra.mxu0 %v833
        %877 = vmatprep.subr.mxu0 0.0
        %878 = vmatpush1.msra.mxu0 %v832
        %879 = vmatprep.subr.mxu0 0.0
        %880 = vmatpush1.msra.mxu0 %v831
        %881 = vmatprep.subr.mxu0 0.0
        %882 = vmatpush1.msra.mxu0 %v830
        %883 = vmatprep.subr.mxu0 0.0
        %884 = vmatpush2.msra.mxu0 0.0
        %885 = vmatprep.subr.mxu0 0.0
        %886 = vmatpush2.msra.mxu0 0.0
        %887 = vmatprep.subr.mxu0 0.0
        %888 = vmatpush2.msra.mxu0 0.0
        %889 = vmatprep.subr.mxu0 0.0
        %890 = vmatpush2.msra.mxu0 0.0
        %891 = vmatprep.subr.mxu0 0.0
        %892 = vmatpush2.msra.mxu0 0.0
        %893 = vmatprep.subr.mxu0 0.0
        %894 = vmatpush2.msra.mxu0 0.0
        %895 = vmatprep.subr.mxu0 0.0
        %896 = vmatpush2.msra.mxu0 0.0
        %897 = vmatprep.subr.mxu0 0.0
        %898 = vmatpush2.msra.mxu0 0.0
        %899 = vmatprep.subr.mxu0 0.0
        %900 = vmatpush2.msra.mxu0 0.0
        %901 = vmatprep.subr.mxu0 0.0
        %902 = vmatpush2.msra.mxu0 0.0
        %903 = vmatprep.subr.mxu0 0.0
        %904 = vmatpush2.msra.mxu0 0.0
        %905 = vmatprep.subr.mxu0 0.0
        %906 = vmatpush2.msra.mxu0 0.0
        %907 = vmatprep.subr.mxu0 0.0
        %908 = vmatpush2.msra.mxu0 0.0
        %909 = vmatprep.subr.mxu0 0.0
        %910 = vmatpush2.msra.mxu0 0.0
        %911 = vmatprep.subr.mxu0 0.0
        %912 = vmatpush2.msra.mxu0 0.0
        %913 = vmatprep.subr.mxu0 0.0
        %914 = vmatpush2.msra.mxu0 0.0
        %915 = vmatprep.mubr.f32.mxu0 0.0
        %916 = vmatmul.mubr.f32.gmra.mxu0 %v291
        %v917 = vpop.f32.mrf.mxu0
        %v918 = vadd.f32 %v850, %v917
        %v919 = vpop.f32.mrf.mxu0
        %920 = vmatprep.mubr.f32.mxu0 0.0
        %921 = vmatmul.mubr.f32.gmra.mxu0 %v292
        %v922 = vpop.f32.mrf.mxu0
        %v923 = vadd.f32 %v850, %v922
        %v924 = vpop.f32.mrf.mxu0
        %925 = vmatprep.mubr.f32.mxu0 0.0
        %926 = vmatmul.mubr.f32.gmra.mxu0 %v293
        %v927 = vpop.f32.mrf.mxu0
        %v928 = vadd.f32 %v850, %v927
        %v929 = vpop.f32.mrf.mxu0
        %930 = vmatprep.mubr.f32.mxu0 0.0
        %931 = vmatmul.mubr.f32.gmra.mxu0 %v294
        %v932 = vpop.f32.mrf.mxu0
        %v933 = vadd.f32 %v850, %v932
        %v934 = vpop.f32.mrf.mxu0
        %935 = vdwg.mxu0
        %936 = vmatprep.subr.mxu0 0.0
        %937 = vmatpush1.xpose.msra.mxu0 0.0
        %938 = vmatprep.subr.mxu0 0.0
        %939 = vmatpush1.xpose.msra.mxu0 0.0
        %940 = vmatprep.subr.mxu0 0.0
        %941 = vmatpush1.xpose.msra.mxu0 0.0
        %942 = vmatprep.subr.mxu0 0.0
        %943 = vmatpush1.xpose.msra.mxu0 0.0
        %944 = vmatprep.subr.mxu0 0.0
        %945 = vmatpush1.xpose.msra.mxu0 0.0
        %946 = vmatprep.subr.mxu0 0.0
        %947 = vmatpush1.xpose.msra.mxu0 0.0
        %948 = vmatprep.subr.mxu0 0.0
        %949 = vmatpush1.xpose.msra.mxu0 0.0
        %950 = vmatprep.subr.mxu0 0.0
        %951 = vmatpush1.xpose.msra.mxu0 0.0
        %952 = vmatprep.subr.mxu0 0.0
        %953 = vmatpush1.xpose.msra.mxu0 0.0
        %954 = vmatprep.subr.mxu0 0.0
        %955 = vmatpush1.xpose.msra.mxu0 0.0
        %956 = vmatprep.subr.mxu0 0.0
        %957 = vmatpush1.xpose.msra.mxu0 0.0
        %958 = vmatprep.subr.mxu0 0.0
        %959 = vmatpush1.xpose.msra.mxu0 0.0
        %960 = vmatprep.subr.mxu0 0.0
        %961 = vmatpush1.xpose.msra.mxu0 %v826
        %962 = vmatprep.subr.mxu0 0.0
        %963 = vmatpush1.xpose.msra.mxu0 %v821
        %964 = vmatprep.subr.mxu0 0.0
        %965 = vmatpush1.xpose.msra.mxu0 %v816
        %966 = vmatprep.subr.mxu0 0.0
        %967 = vmatpush1.xpose.msra.mxu0 %v811
        %968 = vmatprep.subr.mxu0 0.0
        %969 = vmatpush2.xpose.msra.mxu0 0.0
        %970 = vmatprep.subr.mxu0 0.0
        %971 = vmatpush2.xpose.msra.mxu0 0.0
        %972 = vmatprep.subr.mxu0 0.0
        %973 = vmatpush2.xpose.msra.mxu0 0.0
        %974 = vmatprep.subr.mxu0 0.0
        %975 = vmatpush2.xpose.msra.mxu0 0.0
        %976 = vmatprep.subr.mxu0 0.0
        %977 = vmatpush2.xpose.msra.mxu0 0.0
        %978 = vmatprep.subr.mxu0 0.0
        %979 = vmatpush2.xpose.msra.mxu0 0.0
        %980 = vmatprep.subr.mxu0 0.0
        %981 = vmatpush2.xpose.msra.mxu0 0.0
        %982 = vmatprep.subr.mxu0 0.0
        %983 = vmatpush2.xpose.msra.mxu0 0.0
        %984 = vmatprep.subr.mxu0 0.0
        %985 = vmatpush2.xpose.msra.mxu0 0.0
        %986 = vmatprep.subr.mxu0 0.0
        %987 = vmatpush2.xpose.msra.mxu0 0.0
        %988 = vmatprep.subr.mxu0 0.0
        %989 = vmatpush2.xpose.msra.mxu0 0.0
        %990 = vmatprep.subr.mxu0 0.0
        %991 = vmatpush2.xpose.msra.mxu0 0.0
        %992 = vmatprep.subr.mxu0 0.0
        %993 = vmatpush2.xpose.msra.mxu0 0.0
        %994 = vmatprep.subr.mxu0 0.0
        %995 = vmatpush2.xpose.msra.mxu0 0.0
        %996 = vmatprep.subr.mxu0 0.0
        %997 = vmatpush2.xpose.msra.mxu0 0.0
        %998 = vmatprep.subr.mxu0 0.0
        %999 = vmatpush2.xpose.msra.mxu0 0.0
        %1000 = vmatprep.mubr.f32.mxu0 0.0
        %1001 = vmatmul.mubr.f32.gmra.mxu0 %v383
        %v1002 = vpop.f32.mrf.mxu0
        %v1003 = vadd.f32 0.0, %v1002
        %v1004 = vpop.f32.mrf.mxu0
        %1005 = vmatprep.mubr.f32.mxu0 0.0
        %1006 = vmatmul.mubr.f32.gmra.mxu0 %v388
        %v1007 = vpop.f32.mrf.mxu0
        %v1008 = vadd.f32 0.0, %v1007
        %v1009 = vpop.f32.mrf.mxu0
        %1010 = vmatprep.mubr.f32.mxu0 0.0
        %1011 = vmatmul.mubr.f32.gmra.mxu0 %v393
        %v1012 = vpop.f32.mrf.mxu0
        %v1013 = vadd.f32 0.0, %v1012
        %v1014 = vpop.f32.mrf.mxu0
        %1015 = vmatprep.mubr.f32.mxu0 0.0
        %1016 = vmatmul.mubr.f32.gmra.mxu0 %v398
        %v1017 = vpop.f32.mrf.mxu0
        %v1018 = vadd.f32 0.0, %v1017
        %v1019 = vpop.f32.mrf.mxu0
        %1020 = vdwg.mxu0
        %v1021 = vmul.f32 %v1003, 0.088388346
        %v1022 = vmul.f32 %v1008, 0.088388346
        %v1023 = vmul.f32 %v1013, 0.088388346
        %v1024 = vmul.f32 %v1018, 0.088388346
        %vm1025 = vcmask 236544
        %v1026 = vsel %vm1025, %v1021, -inf
        %1027 = vmax.xlane.f32.xlu0 %v1026
        %v1028 = vpop.xlane.xlu0 %1027
        %v1029 = vsel %vm1025, %v1022, -inf
        %1030 = vmax.xlane.f32.xlu0 %v1029
        %v1031 = vpop.xlane.xlu0 %1030
        %v1032 = vsel %vm1025, %v1023, -inf
        %1033 = vmax.xlane.f32.xlu0 %v1032
        %v1034 = vpop.xlane.xlu0 %1033
        %vm1035 = vcmask 233472
        %v1036 = vsel %vm1035, %v1024, -inf
        %1037 = vmax.xlane.f32.xlu0 %v1036
        %v1038 = vpop.xlane.xlu0 %1037
        %v1039 = vsub.f32 %v1021, %v1028
        %v1040 = vsub.f32 %v1022, %v1031
        %v1041 = vsub.f32 %v1023, %v1034
        %v1042 = vsub.f32 %v1024, %v1038
        %v1043 = vmul.f32 %v1039, 1.442695
        %v1044 = vpow.pop %v1043
        %v1045 = vmul.f32 %v1040, 1.442695
        %v1046 = vpow.pop %v1045
        %v1047 = vmul.f32 %v1041, 1.442695
        %v1048 = vpow.pop %v1047
        %v1049 = vmul.f32 %v1042, 1.442695
        %v1050 = vpow.pop %v1049
        %v1051 = vsel %vm1025, %v1044, 0.0
        %1052 = vadd.xlane.f32.xlu0 %v1051
        %v1053 = vpop.xlane.xlu0 %1052
        %v1054 = vsel %vm1025, %v1046, 0.0
        %1055 = vadd.xlane.f32.xlu0 %v1054
        %v1056 = vpop.xlane.xlu0 %1055
        %v1057 = vsel %vm1025, %v1048, 0.0
        %1058 = vadd.xlane.f32.xlu0 %v1057
        %v1059 = vpop.xlane.xlu0 %1058
        %v1060 = vsel %vm1035, %v1050, 0.0
        %1061 = vadd.xlane.f32.xlu0 %v1060
        %v1062 = vpop.xlane.xlu0 %1061
        %v1063 = vrcp.pop %v1053
        %v1064 = vrcp.pop %v1056
        %v1065 = vrcp.pop %v1059
        %v1066 = vrcp.pop %v1062
        %v1067 = vmul.f32 %v1044, %v1063
        %v1068 = vmul.f32 %v1046, %v1064
        %v1069 = vmul.f32 %v1048, %v1065
        %v1070 = vmul.f32 %v1050, %v1066
        %v1072 = vsel %vm1025, %v1067, 0
        %v1075 = vsel %vm1025, %v1068, 0
        %v1078 = vsel %vm1025, %v1069, 0
        %v1081 = vsel %vm1025, %v1070, 0
        %vm1083 = vcmask 1044480
        %v1085 = vsel %vm1083, %v933, 0
        %1087 = vmatprep.subr.mxu0 0.0
        %1088 = vmatpush1.msra.mxu0 0.0
        %1089 = vmatprep.subr.mxu0 0.0
        %1090 = vmatpush1.msra.mxu0 0.0
        %1091 = vmatprep.subr.mxu0 0.0
        %1092 = vmatpush1.msra.mxu0 0.0
        %1093 = vmatprep.subr.mxu0 0.0
        %1094 = vmatpush1.msra.mxu0 0.0
        %1095 = vmatprep.subr.mxu0 0.0
        %1096 = vmatpush1.msra.mxu0 0.0
        %1097 = vmatprep.subr.mxu0 0.0
        %1098 = vmatpush1.msra.mxu0 0.0
        %1099 = vmatprep.subr.mxu0 0.0
        %1100 = vmatpush1.msra.mxu0 0.0
        %1101 = vmatprep.subr.mxu0 0.0
        %1102 = vmatpush1.msra.mxu0 0.0
        %1103 = vmatprep.subr.mxu0 0.0
        %1104 = vmatpush1.msra.mxu0 0.0
        %1105 = vmatprep.subr.mxu0 0.0
        %1106 = vmatpush1.msra.mxu0 0.0
        %1107 = vmatprep.subr.mxu0 0.0
        %1108 = vmatpush1.msra.mxu0 0.0
        %1109 = vmatprep.subr.mxu0 0.0
        %1110 = vmatpush1.msra.mxu0 0.0
        %1111 = vmatprep.subr.mxu0 0.0
        %1112 = vmatpush1.msra.mxu0 %v1085
        %1113 = vmatprep.subr.mxu0 0.0
        %1114 = vmatpush1.msra.mxu0 %v928
        %1115 = vmatprep.subr.mxu0 0.0
        %1116 = vmatpush1.msra.mxu0 %v923
        %1117 = vmatprep.subr.mxu0 0.0
        %1118 = vmatpush1.msra.mxu0 %v918
        %1119 = vmatprep.subr.mxu0 0.0
        %1120 = vmatpush2.msra.mxu0 0.0
        %1121 = vmatprep.subr.mxu0 0.0
        %1122 = vmatpush2.msra.mxu0 0.0
        %1123 = vmatprep.subr.mxu0 0.0
        %1124 = vmatpush2.msra.mxu0 0.0
        %1125 = vmatprep.subr.mxu0 0.0
        %1126 = vmatpush2.msra.mxu0 0.0
        %1127 = vmatprep.subr.mxu0 0.0
        %1128 = vmatpush2.msra.mxu0 0.0
        %1129 = vmatprep.subr.mxu0 0.0
        %1130 = vmatpush2.msra.mxu0 0.0
        %1131 = vmatprep.subr.mxu0 0.0
        %1132 = vmatpush2.msra.mxu0 0.0
        %1133 = vmatprep.subr.mxu0 0.0
        %1134 = vmatpush2.msra.mxu0 0.0
        %1135 = vmatprep.subr.mxu0 0.0
        %1136 = vmatpush2.msra.mxu0 0.0
        %1137 = vmatprep.subr.mxu0 0.0
        %1138 = vmatpush2.msra.mxu0 0.0
        %1139 = vmatprep.subr.mxu0 0.0
        %1140 = vmatpush2.msra.mxu0 0.0
        %1141 = vmatprep.subr.mxu0 0.0
        %1142 = vmatpush2.msra.mxu0 0.0
        %1143 = vmatprep.subr.mxu0 0.0
        %1144 = vmatpush2.msra.mxu0 0.0
        %1145 = vmatprep.subr.mxu0 0.0
        %1146 = vmatpush2.msra.mxu0 0.0
        %1147 = vmatprep.subr.mxu0 0.0
        %1148 = vmatpush2.msra.mxu0 0.0
        %1149 = vmatprep.subr.mxu0 0.0
        %1150 = vmatpush2.msra.mxu0 0.0
        %1151 = vmatprep.mubr.f32.mxu0 0.0
        %1152 = vmatmul.mubr.f32.gmra.mxu0 %v1072
        %v1153 = vpop.f32.mrf.mxu0
        %v1154 = vadd.f32 0.0, %v1153
        %v1155 = vpop.f32.mrf.mxu0
        %1156 = vmatprep.mubr.f32.mxu0 0.0
        %1157 = vmatmul.mubr.f32.gmra.mxu0 %v1075
        %v1158 = vpop.f32.mrf.mxu0
        %v1159 = vadd.f32 0.0, %v1158
        %v1160 = vpop.f32.mrf.mxu0
        %1161 = vmatprep.mubr.f32.mxu0 0.0
        %1162 = vmatmul.mubr.f32.gmra.mxu0 %v1078
        %v1163 = vpop.f32.mrf.mxu0
        %v1164 = vadd.f32 0.0, %v1163
        %v1165 = vpop.f32.mrf.mxu0
        %1166 = vmatprep.mubr.f32.mxu0 0.0
        %1167 = vmatmul.mubr.f32.gmra.mxu0 %v1081
        %v1168 = vpop.f32.mrf.mxu0
        %v1169 = vadd.f32 0.0, %v1168
        %v1170 = vpop.f32.mrf.mxu0
        %1171 = vdwg.mxu0
        %1172 = vmatprep.subr.mxu0 0.0
        %1173 = vmatpush1.xpose.msra.mxu0 0.0
        %1174 = vmatprep.subr.mxu0 0.0
        %1175 = vmatpush1.xpose.msra.mxu0 0.0
        %1176 = vmatprep.subr.mxu0 0.0
        %1177 = vmatpush1.xpose.msra.mxu0 0.0
        %1178 = vmatprep.subr.mxu0 0.0
        %1179 = vmatpush1.xpose.msra.mxu0 0.0
        %1180 = vmatprep.subr.mxu0 0.0
        %1181 = vmatpush1.xpose.msra.mxu0 0.0
        %1182 = vmatprep.subr.mxu0 0.0
        %1183 = vmatpush1.xpose.msra.mxu0 0.0
        %1184 = vmatprep.subr.mxu0 0.0
        %1185 = vmatpush1.xpose.msra.mxu0 0.0
        %1186 = vmatprep.subr.mxu0 0.0
        %1187 = vmatpush1.xpose.msra.mxu0 0.0
        %1188 = vmatprep.subr.mxu0 0.0
        %1189 = vmatpush1.xpose.msra.mxu0 0.0
        %1190 = vmatprep.subr.mxu0 0.0
        %1191 = vmatpush1.xpose.msra.mxu0 0.0
        %1192 = vmatprep.subr.mxu0 0.0
        %1193 = vmatpush1.xpose.msra.mxu0 0.0
        %1194 = vmatprep.subr.mxu0 0.0
        %1195 = vmatpush1.xpose.msra.mxu0 0.0
        %1196 = vmatprep.subr.mxu0 0.0
        %1197 = vmatpush1.xpose.msra.mxu0 %v505
        %1198 = vmatprep.subr.mxu0 0.0
        %1199 = vmatpush1.xpose.msra.mxu0 %v500
        %1200 = vmatprep.subr.mxu0 0.0
        %1201 = vmatpush1.xpose.msra.mxu0 %v495
        %1202 = vmatprep.subr.mxu0 0.0
        %1203 = vmatpush1.xpose.msra.mxu0 %v490
        %1204 = vmatprep.subr.mxu0 0.0
        %1205 = vmatpush2.xpose.msra.mxu0 0.0
        %1206 = vmatprep.subr.mxu0 0.0
        %1207 = vmatpush2.xpose.msra.mxu0 0.0
        %1208 = vmatprep.subr.mxu0 0.0
        %1209 = vmatpush2.xpose.msra.mxu0 0.0
        %1210 = vmatprep.subr.mxu0 0.0
        %1211 = vmatpush2.xpose.msra.mxu0 0.0
        %1212 = vmatprep.subr.mxu0 0.0
        %1213 = vmatpush2.xpose.msra.mxu0 0.0
        %1214 = vmatprep.subr.mxu0 0.0
        %1215 = vmatpush2.xpose.msra.mxu0 0.0
        %1216 = vmatprep.subr.mxu0 0.0
        %1217 = vmatpush2.xpose.msra.mxu0 0.0
        %1218 = vmatprep.subr.mxu0 0.0
        %1219 = vmatpush2.xpose.msra.mxu0 0.0
        %1220 = vmatprep.subr.mxu0 0.0
        %1221 = vmatpush2.xpose.msra.mxu0 0.0
        %1222 = vmatprep.subr.mxu0 0.0
        %1223 = vmatpush2.xpose.msra.mxu0 0.0
        %1224 = vmatprep.subr.mxu0 0.0
        %1225 = vmatpush2.xpose.msra.mxu0 0.0
        %1226 = vmatprep.subr.mxu0 0.0
        %1227 = vmatpush2.xpose.msra.mxu0 0.0
        %1228 = vmatprep.subr.mxu0 0.0
        %1229 = vmatpush2.xpose.msra.mxu0 0.0
        %1230 = vmatprep.subr.mxu0 0.0
        %1231 = vmatpush2.xpose.msra.mxu0 0.0
        %1232 = vmatprep.subr.mxu0 0.0
        %1233 = vmatpush2.xpose.msra.mxu0 0.0
        %1234 = vmatprep.subr.mxu0 0.0
        %1235 = vmatpush2.xpose.msra.mxu0 0.0
        %1236 = vmatprep.mubr.f32.mxu0 0.0
        %1237 = vmatmul.mubr.f32.gmra.mxu0 %v704
        %v1238 = vpop.f32.mrf.mxu0
        %v1239 = vadd.f32 0.0, %v1238
        %v1240 = vpop.f32.mrf.mxu0
        %1241 = vmatprep.mubr.f32.mxu0 0.0
        %1242 = vmatmul.mubr.f32.gmra.mxu0 %v709
        %v1243 = vpop.f32.mrf.mxu0
        %v1244 = vadd.f32 0.0, %v1243
        %v1245 = vpop.f32.mrf.mxu0
        %1246 = vmatprep.mubr.f32.mxu0 0.0
        %1247 = vmatmul.mubr.f32.gmra.mxu0 %v714
        %v1248 = vpop.f32.mrf.mxu0
        %v1249 = vadd.f32 0.0, %v1248
        %v1250 = vpop.f32.mrf.mxu0
        %1251 = vmatprep.mubr.f32.mxu0 0.0
        %1252 = vmatmul.mubr.f32.gmra.mxu0 %v719
        %v1253 = vpop.f32.mrf.mxu0
        %v1254 = vadd.f32 0.0, %v1253
        %v1255 = vpop.f32.mrf.mxu0
        %1256 = vdwg.mxu0
        %v1257 = vmul.f32 %v1239, 0.088388346
        %v1258 = vmul.f32 %v1244, 0.088388346
        %v1259 = vmul.f32 %v1249, 0.088388346
        %v1260 = vmul.f32 %v1254, 0.088388346
        %v1261 = vsel %vm1025, %v1257, -inf
        %1262 = vmax.xlane.f32.xlu0 %v1261
        %v1263 = vpop.xlane.xlu0 %1262
        %v1264 = vsel %vm1025, %v1258, -inf
        %1265 = vmax.xlane.f32.xlu0 %v1264
        %v1266 = vpop.xlane.xlu0 %1265
        %v1267 = vsel %vm1025, %v1259, -inf
        %1268 = vmax.xlane.f32.xlu0 %v1267
        %v1269 = vpop.xlane.xlu0 %1268
        %v1270 = vsel %vm1035, %v1260, -inf
        %1271 = vmax.xlane.f32.xlu0 %v1270
        %v1272 = vpop.xlane.xlu0 %1271
        %v1273 = vsub.f32 %v1257, %v1263
        %v1274 = vsub.f32 %v1258, %v1266
        %v1275 = vsub.f32 %v1259, %v1269
        %v1276 = vsub.f32 %v1260, %v1272
        %v1277 = vmul.f32 %v1273, 1.442695
        %v1278 = vpow.pop %v1277
        %v1279 = vmul.f32 %v1274, 1.442695
        %v1280 = vpow.pop %v1279
        %v1281 = vmul.f32 %v1275, 1.442695
        %v1282 = vpow.pop %v1281
        %v1283 = vmul.f32 %v1276, 1.442695
        %v1284 = vpow.pop %v1283
        %v1285 = vsel %vm1025, %v1278, 0.0
        %1286 = vadd.xlane.f32.xlu0 %v1285
        %v1287 = vpop.xlane.xlu0 %1286
        %v1288 = vsel %vm1025, %v1280, 0.0
        %1289 = vadd.xlane.f32.xlu0 %v1288
        %v1290 = vpop.xlane.xlu0 %1289
        %v1291 = vsel %vm1025, %v1282, 0.0
        %1292 = vadd.xlane.f32.xlu0 %v1291
        %v1293 = vpop.xlane.xlu0 %1292
        %v1294 = vsel %vm1035, %v1284, 0.0
        %1295 = vadd.xlane.f32.xlu0 %v1294
        %v1296 = vpop.xlane.xlu0 %1295
        %v1297 = vrcp.pop %v1287
        %v1298 = vrcp.pop %v1290
        %v1299 = vrcp.pop %v1293
        %v1300 = vrcp.pop %v1296
        %v1301 = vmul.f32 %v1278, %v1297
        %v1302 = vmul.f32 %v1280, %v1298
        %v1303 = vmul.f32 %v1282, %v1299
        %v1304 = vmul.f32 %v1284, %v1300
        %v1306 = vsel %vm1025, %v1301, 0
        %v1309 = vsel %vm1025, %v1302, 0
        %v1312 = vsel %vm1025, %v1303, 0
        %v1315 = vsel %vm1025, %v1304, 0
        %v1318 = vsel %vm1083, %v612, 0
        %1320 = vmatprep.subr.mxu0 0.0
        %1321 = vmatpush1.msra.mxu0 0.0
        %1322 = vmatprep.subr.mxu0 0.0
        %1323 = vmatpush1.msra.mxu0 0.0
        %1324 = vmatprep.subr.mxu0 0.0
        %1325 = vmatpush1.msra.mxu0 0.0
        %1326 = vmatprep.subr.mxu0 0.0
        %1327 = vmatpush1.msra.mxu0 0.0
        %1328 = vmatprep.subr.mxu0 0.0
        %1329 = vmatpush1.msra.mxu0 0.0
        %1330 = vmatprep.subr.mxu0 0.0
        %1331 = vmatpush1.msra.mxu0 0.0
        %1332 = vmatprep.subr.mxu0 0.0
        %1333 = vmatpush1.msra.mxu0 0.0
        %1334 = vmatprep.subr.mxu0 0.0
        %1335 = vmatpush1.msra.mxu0 0.0
        %1336 = vmatprep.subr.mxu0 0.0
        %1337 = vmatpush1.msra.mxu0 0.0
        %1338 = vmatprep.subr.mxu0 0.0
        %1339 = vmatpush1.msra.mxu0 0.0
        %1340 = vmatprep.subr.mxu0 0.0
        %1341 = vmatpush1.msra.mxu0 0.0
        %1342 = vmatprep.subr.mxu0 0.0
        %1343 = vmatpush1.msra.mxu0 0.0
        %1344 = vmatprep.subr.mxu0 0.0
        %1345 = vmatpush1.msra.mxu0 %v1318
        %1346 = vmatprep.subr.mxu0 0.0
        %1347 = vmatpush1.msra.mxu0 %v607
        %1348 = vmatprep.subr.mxu0 0.0
        %1349 = vmatpush1.msra.mxu0 %v602
        %1350 = vmatprep.subr.mxu0 0.0
        %1351 = vmatpush1.msra.mxu0 %v597
        %1352 = vmatprep.subr.mxu0 0.0
        %1353 = vmatpush2.msra.mxu0 0.0
        %1354 = vmatprep.subr.mxu0 0.0
        %1355 = vmatpush2.msra.mxu0 0.0
        %1356 = vmatprep.subr.mxu0 0.0
        %1357 = vmatpush2.msra.mxu0 0.0
        %1358 = vmatprep.subr.mxu0 0.0
        %1359 = vmatpush2.msra.mxu0 0.0
        %1360 = vmatprep.subr.mxu0 0.0
        %1361 = vmatpush2.msra.mxu0 0.0
        %1362 = vmatprep.subr.mxu0 0.0
        %1363 = vmatpush2.msra.mxu0 0.0
        %1364 = vmatprep.subr.mxu0 0.0
        %1365 = vmatpush2.msra.mxu0 0.0
        %1366 = vmatprep.subr.mxu0 0.0
        %1367 = vmatpush2.msra.mxu0 0.0
        %1368 = vmatprep.subr.mxu0 0.0
        %1369 = vmatpush2.msra.mxu0 0.0
        %1370 = vmatprep.subr.mxu0 0.0
        %1371 = vmatpush2.msra.mxu0 0.0
        %1372 = vmatprep.subr.mxu0 0.0
        %1373 = vmatpush2.msra.mxu0 0.0
        %1374 = vmatprep.subr.mxu0 0.0
        %1375 = vmatpush2.msra.mxu0 0.0
        %1376 = vmatprep.subr.mxu0 0.0
        %1377 = vmatpush2.msra.mxu0 0.0
        %1378 = vmatprep.subr.mxu0 0.0
        %1379 = vmatpush2.msra.mxu0 0.0
        %1380 = vmatprep.subr.mxu0 0.0
        %1381 = vmatpush2.msra.mxu0 0.0
        %1382 = vmatprep.subr.mxu0 0.0
        %1383 = vmatpush2.msra.mxu0 0.0
        %1384 = vmatprep.mubr.f32.mxu0 0.0
        %1385 = vmatmul.mubr.f32.gmra.mxu0 %v1306
        %v1386 = vpop.f32.mrf.mxu0
        %v1387 = vadd.f32 0.0, %v1386
        %v1388 = vpop.f32.mrf.mxu0
        %1389 = vmatprep.mubr.f32.mxu0 0.0
        %1390 = vmatmul.mubr.f32.gmra.mxu0 %v1309
        %v1391 = vpop.f32.mrf.mxu0
        %v1392 = vadd.f32 0.0, %v1391
        %v1393 = vpop.f32.mrf.mxu0
        %1394 = vmatprep.mubr.f32.mxu0 0.0
        %1395 = vmatmul.mubr.f32.gmra.mxu0 %v1312
        %v1396 = vpop.f32.mrf.mxu0
        %v1397 = vadd.f32 0.0, %v1396
        %v1398 = vpop.f32.mrf.mxu0
        %1399 = vmatprep.mubr.f32.mxu0 0.0
        %1400 = vmatmul.mubr.f32.gmra.mxu0 %v1315
        %v1401 = vpop.f32.mrf.mxu0
        %v1402 = vadd.f32 0.0, %v1401
        %v1403 = vpop.f32.mrf.mxu0
        %1404 = vdwg.mxu0
        %s1405 = scalar_lea.vmem [#allocation2], 384
        %v1406 = vld [vmem:[%s1405] sm:$0xff]
        %v1407 = vld [vmem:[%s1405 + $0x8] sm:$0xff]
        %v1408 = vld [vmem:[%s1405 + $0x10] sm:$0xff]
        %v1409 = vld [vmem:[%s1405 + $0x18] sm:$0xff]
        %v1410 = vld [vmem:[%s1405 + $0x20] sm:$0xff]
        %v1411 = vld [vmem:[%s1405 + $0x28] sm:$0xff]
        %v1412 = vld [vmem:[%s1405 + $0x30] sm:$0xff]
        %v1413 = vld [vmem:[%s1405 + $0x38] sm:$0xff]
        %v1414 = vld [vmem:[%s1405 + $0x40] sm:$0xff]
        %v1415 = vld [vmem:[%s1405 + $0x48] sm:$0xff]
        %v1416 = vld [vmem:[%s1405 + $0x50] sm:$0xff]
        %v1417 = vld [vmem:[%s1405 + $0x58] sm:$0xff]
        %v1418 = vld [vmem:[%s1405 + $0x60] sm:$0xff]
        %v1419 = vld [vmem:[%s1405 + $0x68] sm:$0xff]
        %v1420 = vld [vmem:[%s1405 + $0x70] sm:$0xff]
        %v1421 = vld [vmem:[%s1405 + $0x78] sm:$0xff]
        %1422 = vmatprep.subr.mxu0 0.0
        %1423 = vmatpush1.msra.mxu0 %v1421
        %1424 = vmatprep.subr.mxu0 0.0
        %1425 = vmatpush1.msra.mxu0 %v1420
        %1426 = vmatprep.subr.mxu0 0.0
        %1427 = vmatpush1.msra.mxu0 %v1419
        %1428 = vmatprep.subr.mxu0 0.0
        %1429 = vmatpush1.msra.mxu0 %v1418
        %1430 = vmatprep.subr.mxu0 0.0
        %1431 = vmatpush1.msra.mxu0 %v1417
        %1432 = vmatprep.subr.mxu0 0.0
        %1433 = vmatpush1.msra.mxu0 %v1416
        %1434 = vmatprep.subr.mxu0 0.0
        %1435 = vmatpush1.msra.mxu0 %v1415
        %1436 = vmatprep.subr.mxu0 0.0
        %1437 = vmatpush1.msra.mxu0 %v1414
        %1438 = vmatprep.subr.mxu0 0.0
        %1439 = vmatpush1.msra.mxu0 %v1413
        %1440 = vmatprep.subr.mxu0 0.0
        %1441 = vmatpush1.msra.mxu0 %v1412
        %1442 = vmatprep.subr.mxu0 0.0
        %1443 = vmatpush1.msra.mxu0 %v1411
        %1444 = vmatprep.subr.mxu0 0.0
        %1445 = vmatpush1.msra.mxu0 %v1410
        %1446 = vmatprep.subr.mxu0 0.0
        %1447 = vmatpush1.msra.mxu0 %v1409
        %1448 = vmatprep.subr.mxu0 0.0
        %1449 = vmatpush1.msra.mxu0 %v1408
        %1450 = vmatprep.subr.mxu0 0.0
        %1451 = vmatpush1.msra.mxu0 %v1407
        %1452 = vmatprep.subr.mxu0 0.0
        %1453 = vmatpush1.msra.mxu0 %v1406
        %1454 = vmatprep.subr.mxu0 0.0
        %1455 = vmatpush2.msra.mxu0 0.0
        %1456 = vmatprep.subr.mxu0 0.0
        %1457 = vmatpush2.msra.mxu0 0.0
        %1458 = vmatprep.subr.mxu0 0.0
        %1459 = vmatpush2.msra.mxu0 0.0
        %1460 = vmatprep.subr.mxu0 0.0
        %1461 = vmatpush2.msra.mxu0 0.0
        %1462 = vmatprep.subr.mxu0 0.0
        %1463 = vmatpush2.msra.mxu0 0.0
        %1464 = vmatprep.subr.mxu0 0.0
        %1465 = vmatpush2.msra.mxu0 0.0
        %1466 = vmatprep.subr.mxu0 0.0
        %1467 = vmatpush2.msra.mxu0 0.0
        %1468 = vmatprep.subr.mxu0 0.0
        %1469 = vmatpush2.msra.mxu0 0.0
        %1470 = vmatprep.subr.mxu0 0.0
        %1471 = vmatpush2.msra.mxu0 0.0
        %1472 = vmatprep.subr.mxu0 0.0
        %1473 = vmatpush2.msra.mxu0 0.0
        %1474 = vmatprep.subr.mxu0 0.0
        %1475 = vmatpush2.msra.mxu0 0.0
        %1476 = vmatprep.subr.mxu0 0.0
        %1477 = vmatpush2.msra.mxu0 0.0
        %1478 = vmatprep.subr.mxu0 0.0
        %1479 = vmatpush2.msra.mxu0 0.0
        %1480 = vmatprep.subr.mxu0 0.0
        %1481 = vmatpush2.msra.mxu0 0.0
        %1482 = vmatprep.subr.mxu0 0.0
        %1483 = vmatpush2.msra.mxu0 0.0
        %1484 = vmatprep.subr.mxu0 0.0
        %1485 = vmatpush2.msra.mxu0 0.0
        %1486 = vmatprep.mubr.f32.mxu0 0.0
        %1487 = vmatmul.mubr.f32.gmra.mxu0 %v1154
        %v1488 = vpop.f32.mrf.mxu0
        %v1489 = vadd.f32 0.0, %v1488
        %v1490 = vpop.f32.mrf.mxu0
        %1491 = vmatprep.mubr.f32.mxu0 0.0
        %1492 = vmatmul.mubr.f32.gmra.mxu0 %v1159
        %v1493 = vpop.f32.mrf.mxu0
        %v1494 = vadd.f32 0.0, %v1493
        %v1495 = vpop.f32.mrf.mxu0
        %1496 = vmatprep.mubr.f32.mxu0 0.0
        %1497 = vmatmul.mubr.f32.gmra.mxu0 %v1164
        %v1498 = vpop.f32.mrf.mxu0
        %v1499 = vadd.f32 0.0, %v1498
        %v1500 = vpop.f32.mrf.mxu0
        %1501 = vmatprep.mubr.f32.mxu0 0.0
        %1502 = vmatmul.mubr.f32.gmra.mxu0 %v1169
        %v1503 = vpop.f32.mrf.mxu0
        %v1504 = vadd.f32 0.0, %v1503
        %v1505 = vpop.f32.mrf.mxu0
        %1506 = vdwg.mxu0
        %v1507 = vadd.f32 %v287, %v1489
        %v1508 = vadd.f32 %v288, %v1494
        %v1509 = vadd.f32 %v289, %v1499
        %v1510 = vadd.f32 %v290, %v1504
        %v1511 = vld [vmem:[%s3 + $0x3] sm:$0x1]
        %v1512 = vlaneseq
        %v1513 = vshrl.u32 %v1512, 7
        %v1514 = vsub.s32 0, %v1513
        %v1515 = vrot.slane %v1511, %v1514
        %v1516 = vadd.f32 %v1507, %v1515
        %v1517 = vadd.f32 %v1508, %v1515
        %v1518 = vadd.f32 %v1509, %v1515
        %v1519 = vadd.f32 %v1510, %v1515
        %s1520 = scalar_lea.vmem [#allocation2], 896
        %v1521 = vld [vmem:[%s1520] sm:$0xff]
        %v1522 = vld [vmem:[%s1520 + $0x8] sm:$0xff]
        %v1523 = vld [vmem:[%s1520 + $0x10] sm:$0xff]
        %v1524 = vld [vmem:[%s1520 + $0x18] sm:$0xff]
        %v1525 = vld [vmem:[%s1520 + $0x20] sm:$0xff]
        %v1526 = vld [vmem:[%s1520 + $0x28] sm:$0xff]
        %v1527 = vld [vmem:[%s1520 + $0x30] sm:$0xff]
        %v1528 = vld [vmem:[%s1520 + $0x38] sm:$0xff]
        %v1529 = vld [vmem:[%s1520 + $0x40] sm:$0xff]
        %v1530 = vld [vmem:[%s1520 + $0x48] sm:$0xff]
        %v1531 = vld [vmem:[%s1520 + $0x50] sm:$0xff]
        %v1532 = vld [vmem:[%s1520 + $0x58] sm:$0xff]
        %v1533 = vld [vmem:[%s1520 + $0x60] sm:$0xff]
        %v1534 = vld [vmem:[%s1520 + $0x68] sm:$0xff]
        %v1535 = vld [vmem:[%s1520 + $0x70] sm:$0xff]
        %v1536 = vld [vmem:[%s1520 + $0x78] sm:$0xff]
        %1537 = vmatprep.subr.mxu0 0.0
        %1538 = vmatpush1.msra.mxu0 %v1536
        %1539 = vmatprep.subr.mxu0 0.0
        %1540 = vmatpush1.msra.mxu0 %v1535
        %1541 = vmatprep.subr.mxu0 0.0
        %1542 = vmatpush1.msra.mxu0 %v1534
        %1543 = vmatprep.subr.mxu0 0.0
        %1544 = vmatpush1.msra.mxu0 %v1533
        %1545 = vmatprep.subr.mxu0 0.0
        %1546 = vmatpush1.msra.mxu0 %v1532
        %1547 = vmatprep.subr.mxu0 0.0
        %1548 = vmatpush1.msra.mxu0 %v1531
        %1549 = vmatprep.subr.mxu0 0.0
        %1550 = vmatpush1.msra.mxu0 %v1530
        %1551 = vmatprep.subr.mxu0 0.0
        %1552 = vmatpush1.msra.mxu0 %v1529
        %1553 = vmatprep.subr.mxu0 0.0
        %1554 = vmatpush1.msra.mxu0 %v1528
        %1555 = vmatprep.subr.mxu0 0.0
        %1556 = vmatpush1.msra.mxu0 %v1527
        %1557 = vmatprep.subr.mxu0 0.0
        %1558 = vmatpush1.msra.mxu0 %v1526
        %1559 = vmatprep.subr.mxu0 0.0
        %1560 = vmatpush1.msra.mxu0 %v1525
        %1561 = vmatprep.subr.mxu0 0.0
        %1562 = vmatpush1.msra.mxu0 %v1524
        %1563 = vmatprep.subr.mxu0 0.0
        %1564 = vmatpush1.msra.mxu0 %v1523
        %1565 = vmatprep.subr.mxu0 0.0
        %1566 = vmatpush1.msra.mxu0 %v1522
        %1567 = vmatprep.subr.mxu0 0.0
        %1568 = vmatpush1.msra.mxu0 %v1521
        %1569 = vmatprep.subr.mxu0 0.0
        %1570 = vmatpush2.msra.mxu0 0.0
        %1571 = vmatprep.subr.mxu0 0.0
        %1572 = vmatpush2.msra.mxu0 0.0
        %1573 = vmatprep.subr.mxu0 0.0
        %1574 = vmatpush2.msra.mxu0 0.0
        %1575 = vmatprep.subr.mxu0 0.0
        %1576 = vmatpush2.msra.mxu0 0.0
        %1577 = vmatprep.subr.mxu0 0.0
        %1578 = vmatpush2.msra.mxu0 0.0
        %1579 = vmatprep.subr.mxu0 0.0
        %1580 = vmatpush2.msra.mxu0 0.0
        %1581 = vmatprep.subr.mxu0 0.0
        %1582 = vmatpush2.msra.mxu0 0.0
        %1583 = vmatprep.subr.mxu0 0.0
        %1584 = vmatpush2.msra.mxu0 0.0
        %1585 = vmatprep.subr.mxu0 0.0
        %1586 = vmatpush2.msra.mxu0 0.0
        %1587 = vmatprep.subr.mxu0 0.0
        %1588 = vmatpush2.msra.mxu0 0.0
        %1589 = vmatprep.subr.mxu0 0.0
        %1590 = vmatpush2.msra.mxu0 0.0
        %1591 = vmatprep.subr.mxu0 0.0
        %1592 = vmatpush2.msra.mxu0 0.0
        %1593 = vmatprep.subr.mxu0 0.0
        %1594 = vmatpush2.msra.mxu0 0.0
        %1595 = vmatprep.subr.mxu0 0.0
        %1596 = vmatpush2.msra.mxu0 0.0
        %1597 = vmatprep.subr.mxu0 0.0
        %1598 = vmatpush2.msra.mxu0 0.0
        %1599 = vmatprep.subr.mxu0 0.0
        %1600 = vmatpush2.msra.mxu0 0.0
        %1601 = vmatprep.mubr.f32.mxu0 0.0
        %1602 = vmatmul.mubr.f32.gmra.mxu0 %v1387
        %v1603 = vpop.f32.mrf.mxu0
        %v1604 = vadd.f32 0.0, %v1603
        %v1605 = vpop.f32.mrf.mxu0
        %1606 = vmatprep.mubr.f32.mxu0 0.0
        %1607 = vmatmul.mubr.f32.gmra.mxu0 %v1392
        %v1608 = vpop.f32.mrf.mxu0
        %v1609 = vadd.f32 0.0, %v1608
        %v1610 = vpop.f32.mrf.mxu0
        %1611 = vmatprep.mubr.f32.mxu0 0.0
        %1612 = vmatmul.mubr.f32.gmra.mxu0 %v1397
        %v1613 = vpop.f32.mrf.mxu0
        %v1614 = vadd.f32 0.0, %v1613
        %v1615 = vpop.f32.mrf.mxu0
        %1616 = vmatprep.mubr.f32.mxu0 0.0
        %1617 = vmatmul.mubr.f32.gmra.mxu0 %v1402
        %v1618 = vpop.f32.mrf.mxu0
        %v1619 = vadd.f32 0.0, %v1618
        %v1620 = vpop.f32.mrf.mxu0
        %1621 = vdwg.mxu0
        %v1622 = vadd.f32 %v291, %v1604
        %v1623 = vadd.f32 %v292, %v1609
        %v1624 = vadd.f32 %v293, %v1614
        %v1625 = vadd.f32 %v294, %v1619
        %v1626 = vld [vmem:[%s3 + $0x7] sm:$0x1]
        %v1627 = vlaneseq
        %v1628 = vshrl.u32 %v1627, 7
        %v1629 = vsub.s32 0, %v1628
        %v1630 = vrot.slane %v1626, %v1629
        %v1631 = vadd.f32 %v1622, %v1630
        %v1632 = vadd.f32 %v1623, %v1630
        %v1633 = vadd.f32 %v1624, %v1630
        %v1634 = vadd.f32 %v1625, %v1630
        %v1635 = vld [vmem:[%s4] sm:$0x1]
        %v1636 = vld [vmem:[%s5] sm:$0x1]
        %1637 = vadd.xlane.f32.xlu0 %v1516
        %v1638 = vpop.xlane.xlu0 %1637
        %1639 = vadd.xlane.f32.xlu0 %v1517
        %v1640 = vpop.xlane.xlu0 %1639
        %1641 = vadd.xlane.f32.xlu0 %v1518
        %v1642 = vpop.xlane.xlu0 %1641
        %v1643 = vsel %vm1083, %v1519, 0.0
        %1644 = vadd.xlane.f32.xlu0 %v1643
        %v1645 = vpop.xlane.xlu0 %1644
        %v1646 = vrcp.pop 128.0
        %v1647 = vmul.f32 %v1638, %v1646
        %v1648 = vmul.f32 %v1640, %v1646
        %v1649 = vmul.f32 %v1642, %v1646
        %v1650 = vmul.f32 %v1645, %v1646
        %v1651 = vsub.f32 %v1516, %v1647
        %v1652 = vsub.f32 %v1517, %v1648
        %v1653 = vsub.f32 %v1518, %v1649
        %v1654 = vsub.f32 %v1519, %v1650
        %v1655 = vmul.f32 %v1651, %v1651
        %v1656 = vmul.f32 %v1652, %v1652
        %v1657 = vmul.f32 %v1653, %v1653
        %v1658 = vmul.f32 %v1654, %v1654
        %1659 = vadd.xlane.f32.xlu0 %v1655
        %v1660 = vpop.xlane.xlu0 %1659
        %1661 = vadd.xlane.f32.xlu0 %v1656
        %v1662 = vpop.xlane.xlu0 %1661
        %1663 = vadd.xlane.f32.xlu0 %v1657
        %v1664 = vpop.xlane.xlu0 %1663
        %v1665 = vsel %vm1083, %v1658, 0.0
        %1666 = vadd.xlane.f32.xlu0 %v1665
        %v1667 = vpop.xlane.xlu0 %1666
        %v1668 = vmul.f32 %v1660, %v1646
        %v1669 = vmul.f32 %v1662, %v1646
        %v1670 = vmul.f32 %v1664, %v1646
        %v1671 = vmul.f32 %v1667, %v1646
        %v1672 = vadd.f32 %v1668, 1e-05
        %v1673 = vadd.f32 %v1669, 1e-05
        %v1674 = vadd.f32 %v1670, 1e-05
        %v1675 = vadd.f32 %v1671, 1e-05
        %v1676 = vrsqrt.pop %v1672
        %v1677 = vrsqrt.pop %v1673
        %v1678 = vrsqrt.pop %v1674
        %v1679 = vrsqrt.pop %v1675
        %v1680 = vmul.f32 %v1651, %v1676
        %v1681 = vmul.f32 %v1652, %v1677
        %v1682 = vmul.f32 %v1653, %v1678
        %v1683 = vmul.f32 %v1654, %v1679
        %v1684 = vlaneseq
        %v1685 = vshrl.u32 %v1684, 7
        %v1686 = vsub.s32 0, %v1685
        %v1687 = vrot.slane %v1635, %v1686
        %v1688 = vmul.f32 %v1680, %v1687
        %v1689 = vmul.f32 %v1681, %v1687
        %v1690 = vmul.f32 %v1682, %v1687
        %v1691 = vmul.f32 %v1683, %v1687
        %v1692 = vlaneseq
        %v1693 = vshrl.u32 %v1692, 7
        %v1694 = vsub.s32 0, %v1693
        %v1695 = vrot.slane %v1636, %v1694
        %v1696 = vadd.f32 %v1688, %v1695
        %v1697 = vadd.f32 %v1689, %v1695
        %v1698 = vadd.f32 %v1690, %v1695
        %v1699 = vadd.f32 %v1691, %v1695
        %1700 = vst [vmem:[%s286] sm:$0xff] %v1696
        %1701 = vst [vmem:[%s286 + $0x10] sm:$0xff] %v1697
        %1702 = vst [vmem:[%s286 + $0x20] sm:$0xff] %v1698
        %1703 = vst [vmem:[%s286 + $0x30] sm:$0x1f] %v1699
        %v1704 = vld [vmem:[%s4 + $0x1] sm:$0x1]
        %v1705 = vld [vmem:[%s5 + $0x1] sm:$0x1]
        %1706 = vadd.xlane.f32.xlu0 %v1631
        %v1707 = vpop.xlane.xlu0 %1706
        %1708 = vadd.xlane.f32.xlu0 %v1632
        %v1709 = vpop.xlane.xlu0 %1708
        %1710 = vadd.xlane.f32.xlu0 %v1633
        %v1711 = vpop.xlane.xlu0 %1710
        %v1712 = vsel %vm1083, %v1634, 0.0
        %1713 = vadd.xlane.f32.xlu0 %v1712
        %v1714 = vpop.xlane.xlu0 %1713
        %v1715 = vmul.f32 %v1707, %v1646
        %v1716 = vmul.f32 %v1709, %v1646
        %v1717 = vmul.f32 %v1711, %v1646
        %v1718 = vmul.f32 %v1714, %v1646
        %v1719 = vsub.f32 %v1631, %v1715
        %v1720 = vsub.f32 %v1632, %v1716
        %v1721 = vsub.f32 %v1633, %v1717
        %v1722 = vsub.f32 %v1634, %v1718
        %v1723 = vmul.f32 %v1719, %v1719
        %v1724 = vmul.f32 %v1720, %v1720
        %v1725 = vmul.f32 %v1721, %v1721
        %v1726 = vmul.f32 %v1722, %v1722
        %1727 = vadd.xlane.f32.xlu0 %v1723
        %v1728 = vpop.xlane.xlu0 %1727
        %1729 = vadd.xlane.f32.xlu0 %v1724
        %v1730 = vpop.xlane.xlu0 %1729
        %1731 = vadd.xlane.f32.xlu0 %v1725
        %v1732 = vpop.xlane.xlu0 %1731
        %v1733 = vsel %vm1083, %v1726, 0.0
        %1734 = vadd.xlane.f32.xlu0 %v1733
        %v1735 = vpop.xlane.xlu0 %1734
        %v1736 = vmul.f32 %v1728, %v1646
        %v1737 = vmul.f32 %v1730, %v1646
        %v1738 = vmul.f32 %v1732, %v1646
        %v1739 = vmul.f32 %v1735, %v1646
        %v1740 = vadd.f32 %v1736, 1e-05
        %v1741 = vadd.f32 %v1737, 1e-05
        %v1742 = vadd.f32 %v1738, 1e-05
        %v1743 = vadd.f32 %v1739, 1e-05
        %v1744 = vrsqrt.pop %v1740
        %v1745 = vrsqrt.pop %v1741
        %v1746 = vrsqrt.pop %v1742
        %v1747 = vrsqrt.pop %v1743
        %v1748 = vmul.f32 %v1719, %v1744
        %v1749 = vmul.f32 %v1720, %v1745
        %v1750 = vmul.f32 %v1721, %v1746
        %v1751 = vmul.f32 %v1722, %v1747
        %v1752 = vlaneseq
        %v1753 = vshrl.u32 %v1752, 7
        %v1754 = vsub.s32 0, %v1753
        %v1755 = vrot.slane %v1704, %v1754
        %v1756 = vmul.f32 %v1748, %v1755
        %v1757 = vmul.f32 %v1749, %v1755
        %v1758 = vmul.f32 %v1750, %v1755
        %v1759 = vmul.f32 %v1751, %v1755
        %v1760 = vlaneseq
        %v1761 = vshrl.u32 %v1760, 7
        %v1762 = vsub.s32 0, %v1761
        %v1763 = vrot.slane %v1705, %v1762
        %v1764 = vadd.f32 %v1756, %v1763
        %v1765 = vadd.f32 %v1757, %v1763
        %v1766 = vadd.f32 %v1758, %v1763
        %v1767 = vadd.f32 %v1759, %v1763
        %1768 = vst [vmem:[%s286 + $0x8] sm:$0xff] %v1764
        %1769 = vst [vmem:[%s286 + $0x18] sm:$0xff] %v1765
        %1770 = vst [vmem:[%s286 + $0x28] sm:$0xff] %v1766
        %1771 = vst [vmem:[%s286 + $0x38] sm:$0x1f] %v1767
        %p1772 = scmp.lt.s32.totalorder %s18, 1
        %s1773 = scalar_select %p1772, %s18, 1
        %s1774 = smul.addr %s1773, 8
        %s1775 = smul.addr %s1774, 8
        %s1776 = scalar_lea.vmem %s6, %s1775
        // Predicated region
        $region49: #{tpu_custom_call.1} parent=43 // pred_check
          %p1777 = pneg %p172
        $region50: #{tpu_custom_call.1} parent=43 // pred_check_branch
          %1779 = sbr.rel (%p1777) target = $region52
        $region51: #{tpu_custom_call.1} parent=43 // pred_region
          _
        $region52: #{tpu_custom_call.1} parent=43 // pred_fallthru
          _
      $region44: #{tpu_custom_call.1} parent=5 // pred_fallthru
        _
      %p1780 = scmp.le.s32.totalorder 2, %s13
      // Predicated region
      $region53: #{tpu_custom_call.1} parent=5 // pred_check
        %p1781 = pneg %p1780
      $region54: #{tpu_custom_call.1} parent=5 // pred_check_branch
        %1783 = sbr.rel (%p1781) target = $region56
      $region55: #{tpu_custom_call.1} parent=5 // pred_region
        %s1784 = ssub.s32 %s13, 2
        // Predicated region
        $region57: #{tpu_custom_call.1} parent=55 // pred_check
          %p1785 = pneg %p178
        $region58: #{tpu_custom_call.1} parent=55 // pred_check_branch
          %1787 = sbr.rel (%p1785) target = $region60
        $region59: #{tpu_custom_call.1} parent=55 // pred_region
          %p1788 = scmp.lt.s32.totalorder %s19, 1
          %s1789 = scalar_select %p1788, %s19, 1
          %s1790 = smul.addr %s1789, 8
          %s1791 = smul.addr %s1790, 8
          %s1792 = scalar_lea.vmem %s6, %s1791
        $region60: #{tpu_custom_call.1} parent=55 // pred_fallthru
          _
      $region56: #{tpu_custom_call.1} parent=5 // pred_fallthru
        _
    $region6: #{tpu_custom_call.1} parent=1 // loop_footer
      %s17 = sadd.s32 1, %s13
    $region7: #{tpu_custom_call.1} parent=1 // loop_footer_branch
      %12 = sbr.rel target = $region3
    $region8: #{tpu_custom_call.1} parent=1 // loop_exit
      _
    %1793 = vsyncpa [#allocation3], 1
    %s1794 = scalar_lea.sflag [#allocation3], 1
    %1795 = vsyncpa %s1794, 1

</llo_original>
